<compile_context>
chip_gen: v5e
topology: v5e:2x2
jax: 0.10.0
libtpu: 0.0.40
codegen_flags: <defaults>
</compile_context>

<pallas_src>
import functools

import jax
import jax.numpy as jnp
from jax.experimental import pallas as pl
from jax.experimental.pallas import tpu as pltpu  # noqa: F401  (kept for TPU-specific tuning hooks)

# ----------------------------- small RoBERTa config -----------------------------
VOCAB        = 64
HIDDEN       = 32
N_HEADS      = 4
HEAD_DIM     = HIDDEN // N_HEADS
INTERMEDIATE = 64
N_LAYERS     = 2
NUM_CLASSES  = 3
PAD_ID       = 1            # roberta padding_idx
LN_EPS       = 1e-5
MASK_BIAS    = -1e9
INV_SQRT2    = 0.7071067811865476

LANE       = 128                       # TPU lane width
QKV_BLOCKS = 2 * N_HEADS + 1           # per-head Q blocks, one K block, per-head V blocks
QKV_WIDTH  = QKV_BLOCKS * LANE         # 1152 lanes, every slice is 128-aligned


def _layer_norm(x, g, b):
    mu = jnp.mean(x, axis=-1, keepdims=True)
    var = jnp.mean((x - mu) * (x - mu), axis=-1, keepdims=True)
    return (x - mu) * jax.lax.rsqrt(var + LN_EPS) * g + b


# --------------------------------- fused kernel ----------------------------------
def _encoder_kernel(
    sel_ref, bias_ref, emb_ref, eln_ref,
    wqkv_ref, bqkv_ref, wo_ref, bo_ref,
    w1_ref, b1_ref, w2_ref, b2_ref, ln1_ref, ln2_ref,
    cls_wd_ref, cls_bd_ref, cls_wo_ref, cls_bo_ref,
    logits_ref, scores_ref,
):
    f32 = jnp.float32
    bf16 = jnp.bfloat16

    # Embedding LayerNorm seeds the hidden state (kept entirely as a local value).
    eln = eln_ref[...]                                    # (2, H): gamma row 0, beta row 1
    x = _layer_norm(emb_ref[...], eln[0:1], eln[1:2])     # (T, H) f32

    # Precomputed additive attention bias: block-diagonal over batches + key padding.
    bias = bias_ref[...]                                  # (T, T) f32, hoisted out of the loop

    for l in range(N_LAYERS):                             # unrolled; static weight indices
        # ---- fused QKV: one bf16 matmul against the lane-padded fused weight ----
        qkv = (jnp.dot(x.astype(bf16), wqkv_ref[l],
                       preferred_element_type=f32) + bqkv_ref[l])   # (T, QKV_WIDTH) f32
        qkv_b = qkv.astype(bf16)
        k = qkv_b[:, N_HEADS * LANE:(N_HEADS + 1) * LANE]           # (T, 128), K block

        # ---- lane-dense multi-head attention, fully 2-D ----
        ctx = None
        for h in range(N_HEADS):
            q_h = qkv_b[:, h * LANE:(h + 1) * LANE]                 # head-h Q (scale folded in)
            s = jax.lax.dot_general(q_h, k, (((1,), (1,)), ((), ())),
                                    preferred_element_type=f32) + bias        # (T, T)
            p = jnp.exp(s - jnp.max(s, axis=-1, keepdims=True))
            p = p * pl.reciprocal(jnp.sum(p, axis=-1, keepdims=True), approx=True)
            v_h = qkv_b[:, (N_HEADS + 1 + h) * LANE:(N_HEADS + 2 + h) * LANE]  # head-h V
            c = jnp.dot(p.astype(bf16), v_h, preferred_element_type=f32)       # (T, 128)
            ctx = c if ctx is None else ctx + c

        # Output projection: Wo zero-padded to 128 rows, so no sub-128-lane slice of ctx.
        attn = (jnp.dot(ctx.astype(bf16), wo_ref[l],
                        preferred_element_type=f32) + bo_ref[l])    # (T, H)
        ln1 = ln1_ref[l]                                            # (2, H)
        h1 = _layer_norm(attn + x, ln1[0:1], ln1[1:2])

        # ---- feed-forward (exact erf GELU, as in HF roberta) ----
        ff = jnp.dot(h1.astype(bf16), w1_ref[l], preferred_element_type=f32) + b1_ref[l]
        ff = 0.5 * ff * (1.0 + jax.lax.erf(ff * INV_SQRT2))
        ff = jnp.dot(ff.astype(bf16), w2_ref[l], preferred_element_type=f32) + b2_ref[l]
        ln2 = ln2_ref[l]
        x = _layer_norm(ff + h1, ln2[0:1], ln2[1:2])

    # ---- classifier head on the <s> (first) token of each sequence + sigmoid ----
    # sel is a precomputed (B, T) one-hot matrix (hoisted out of the kernel).
    pooled = jnp.dot(sel_ref[...], x, preferred_element_type=f32)           # (B, H)
    z = jnp.tanh(jnp.dot(pooled.astype(bf16), cls_wd_ref[...],
                         preferred_element_type=f32) + cls_bd_ref[...])
    logits = jnp.dot(z.astype(bf16), cls_wo_ref[...],
                     preferred_element_type=f32) + cls_bo_ref[...]
    logits_ref[...] = logits
    scores_ref[...] = jax.nn.sigmoid(logits)


# ----------------------------- parameter init (synthetic) ------------------------
def init_params(key, seq_len):
    max_pos = seq_len + PAD_ID + 1
    ks = iter(jax.random.split(key, 12))
    std = 0.02
    L = N_LAYERS

    def nrm(k, shape):
        return (std * jax.random.normal(k, shape)).astype(jnp.float32)

    return {
        "word_emb": nrm(next(ks), (VOCAB, HIDDEN)),
        "pos_emb":  nrm(next(ks), (max_pos, HIDDEN)),
        "type_emb": nrm(next(ks), (1, HIDDEN)),
        "emb_ln_g": jnp.ones((1, HIDDEN), jnp.float32),
        "emb_ln_b": jnp.zeros((1, HIDDEN), jnp.float32),
        # stacked per-layer weights (leading layer axis)
        "wq": nrm(next(ks), (L, HIDDEN, HIDDEN)), "bq": jnp.zeros((L, 1, HIDDEN), jnp.float32),
        "wk": nrm(next(ks), (L, HIDDEN, HIDDEN)), "bk": jnp.zeros((L, 1, HIDDEN), jnp.float32),
        "wv": nrm(next(ks), (L, HIDDEN, HIDDEN)), "bv": jnp.zeros((L, 1, HIDDEN), jnp.float32),
        "wo": nrm(next(ks), (L, HIDDEN, HIDDEN)), "bo": jnp.zeros((L, 1, HIDDEN), jnp.float32),
        "ln1_g": jnp.ones((L, 1, HIDDEN), jnp.float32), "ln1_b": jnp.zeros((L, 1, HIDDEN), jnp.float32),
        "w1": nrm(next(ks), (L, HIDDEN, INTERMEDIATE)), "b1": jnp.zeros((L, 1, INTERMEDIATE), jnp.float32),
        "w2": nrm(next(ks), (L, INTERMEDIATE, HIDDEN)), "b2": jnp.zeros((L, 1, HIDDEN), jnp.float32),
        "ln2_g": jnp.ones((L, 1, HIDDEN), jnp.float32), "ln2_b": jnp.zeros((L, 1, HIDDEN), jnp.float32),
        # classifier head
        "cls_wd": nrm(next(ks), (HIDDEN, HIDDEN)),
        "cls_bd": jnp.zeros((1, HIDDEN), jnp.float32),
        "cls_wo": nrm(next(ks), (HIDDEN, NUM_CLASSES)),
        "cls_bo": jnp.zeros((1, NUM_CLASSES), jnp.float32),
    }


# ------------------- pack raw params into kernel-ready tensors -------------------
def _pack_kernel_params(params):
    """Fused lane-padded QKV (scale folded into Q), padded Wo, packed LN pairs, bf16 weights."""
    L = N_LAYERS
    scale = 1.0 / float(HEAD_DIM) ** 0.5

    wqkv = jnp.zeros((L, HIDDEN, QKV_WIDTH), jnp.float32)
    bqkv = jnp.zeros((L, 1, QKV_WIDTH), jnp.float32)
    for h in range(N_HEADS):
        c0, c1 = h * HEAD_DIM, (h + 1) * HEAD_DIM
        qo = h * LANE + c0                       # head-h Q block, original column positions
        vo = (N_HEADS + 1 + h) * LANE + c0       # head-h V block
        wqkv = wqkv.at[:, :, qo:qo + HEAD_DIM].set(params["wq"][:, :, c0:c1] * scale)
        bqkv = bqkv.at[:, :, qo:qo + HEAD_DIM].set(params["bq"][:, :, c0:c1] * scale)
        wqkv = wqkv.at[:, :, vo:vo + HEAD_DIM].set(params["wv"][:, :, c0:c1])
        bqkv = bqkv.at[:, :, vo:vo + HEAD_DIM].set(params["bv"][:, :, c0:c1])
    ko = N_HEADS * LANE                          # full K block
    wqkv = wqkv.at[:, :, ko:ko + HIDDEN].set(params["wk"])
    bqkv = bqkv.at[:, :, ko:ko + HIDDEN].set(params["bk"])

    wo_pad = jnp.zeros((L, LANE, HIDDEN), jnp.float32).at[:, :HIDDEN, :].set(params["wo"])

    ln1 = jnp.concatenate([params["ln1_g"], params["ln1_b"]], axis=1)   # (L, 2, H)
    ln2 = jnp.concatenate([params["ln2_g"], params["ln2_b"]], axis=1)   # (L, 2, H)
    eln = jnp.concatenate([params["emb_ln_g"], params["emb_ln_b"]], axis=0)  # (2, H)

    bf = jnp.bfloat16
    return dict(
        wqkv=wqkv.astype(bf), bqkv=bqkv,
        wo=wo_pad.astype(bf), bo=params["bo"],
        w1=params["w1"].astype(bf), b1=params["b1"],
        w2=params["w2"].astype(bf), b2=params["b2"],
        ln1=ln1, ln2=ln2, eln=eln,
        cls_wd=params["cls_wd"].astype(bf), cls_bd=params["cls_bd"],
        cls_wo=params["cls_wo"].astype(bf), cls_bo=params["cls_bo"],
    )


# ---------------------------------- forward --------------------------------------
def bertweet_base_sentiment(params, input_ids, attention_mask):
    """Returns (y_logits, y_scores), matching the PyTorch module's forward."""
    B, S = input_ids.shape
    T = B * S

    # --- embeddings (gathers + roberta position ids stay in plain JAX) ---
    pad_mask = (input_ids != PAD_ID).astype(jnp.int32)
    pos_ids = jnp.cumsum(pad_mask, axis=1) * pad_mask + PAD_ID
    emb = (jnp.take(params["word_emb"], input_ids, axis=0)
           + jnp.take(params["pos_emb"], pos_ids, axis=0)
           + params["type_emb"][0][None, None, :])
    emb = emb.reshape(T, HIDDEN).astype(jnp.float32)

    # --- hoisted constants: block-diagonal key-mask bias and <s>-token one-hot ---
    bids = jnp.arange(T, dtype=jnp.int32) // S
    same_batch = bids[:, None] == bids[None, :]
    key_ok = attention_mask.reshape(T).astype(bool)
    attn_bias = jnp.where(same_batch & key_ok[None, :], 0.0, MASK_BIAS).astype(jnp.float32)
    sel = (jnp.arange(T, dtype=jnp.int32)[None, :]
           == (jnp.arange(B, dtype=jnp.int32) * S)[:, None]).astype(jnp.float32)   # (B, T)

    kp = _pack_kernel_params(params)

    out_shape = (jax.ShapeDtypeStruct((B, NUM_CLASSES), jnp.float32),
                 jax.ShapeDtypeStruct((B, NUM_CLASSES), jnp.float32))

    # No grid: one kernel invocation, every array fully resident in VMEM (<1 MiB total).
    y_logits, y_scores = pl.pallas_call(
        _encoder_kernel,
        out_shape=out_shape,
    )(sel, attn_bias, emb, kp["eln"],
      kp["wqkv"], kp["bqkv"], kp["wo"], kp["bo"],
      kp["w1"], kp["b1"], kp["w2"], kp["b2"], kp["ln1"], kp["ln2"],
      kp["cls_wd"], kp["cls_bd"], kp["cls_wo"], kp["cls_bo"])
    return y_logits, y_scores


# ------------------------------------ main ----------------------------------------
if __name__ == "__main__":
    B, S = 2, 8
    key = jax.random.PRNGKey(0)
    k_param, k_ids = jax.random.split(key)

    params = init_params(k_param, S)

    input_ids = jax.random.randint(k_ids, (B, S), 2, VOCAB, dtype=jnp.int32)
    input_ids = input_ids.at[:, 0].set(0)                 # <s> token
    input_ids = input_ids.at[1, -2:].set(PAD_ID)          # pad tail of sample 1
    attention_mask = (input_ids != PAD_ID).astype(jnp.int32)

    fwd = jax.jit(functools.partial(bertweet_base_sentiment, params))
    y_logits, y_scores = fwd(input_ids, attention_mask)
    jax.block_until_ready((y_logits, y_scores))

    assert y_logits.shape == (B, NUM_CLASSES) and y_scores.shape == (B, NUM_CLASSES)
    assert bool(jnp.all(jnp.isfinite(y_logits))) and bool(jnp.all((y_scores > 0) & (y_scores < 1)))
    print("KERNEL_OK")
</pallas_src>

<mosaic_0001>
module attributes {stable_mosaic.version = 11 : i64} {
  func.func @_encoder_kernel(%arg0: memref<2x16xf32, #tpu.memory_space<vmem>>, %arg1: memref<16x16xf32, #tpu.memory_space<vmem>>, %arg2: memref<16x32xf32, #tpu.memory_space<vmem>>, %arg3: memref<2x32xf32, #tpu.memory_space<vmem>>, %arg4: memref<2x32x1152xbf16, #tpu.memory_space<vmem>>, %arg5: memref<2x1x1152xf32, #tpu.memory_space<vmem>>, %arg6: memref<2x128x32xbf16, #tpu.memory_space<vmem>>, %arg7: memref<2x1x32xf32, #tpu.memory_space<vmem>>, %arg8: memref<2x32x64xbf16, #tpu.memory_space<vmem>>, %arg9: memref<2x1x64xf32, #tpu.memory_space<vmem>>, %arg10: memref<2x64x32xbf16, #tpu.memory_space<vmem>>, %arg11: memref<2x1x32xf32, #tpu.memory_space<vmem>>, %arg12: memref<2x2x32xf32, #tpu.memory_space<vmem>>, %arg13: memref<2x2x32xf32, #tpu.memory_space<vmem>>, %arg14: memref<32x32xbf16, #tpu.memory_space<vmem>>, %arg15: memref<1x32xf32, #tpu.memory_space<vmem>>, %arg16: memref<32x3xbf16, #tpu.memory_space<vmem>>, %arg17: memref<1x3xf32, #tpu.memory_space<vmem>>, %arg18: memref<2x3xf32, #tpu.memory_space<vmem>>, %arg19: memref<2x3xf32, #tpu.memory_space<vmem>>) attributes {dimension_semantics = [], scalar_prefetch = 0 : i64, scratch_operands = 0 : i64, tpu.core_type = #tpu.core_type<tc>} {
    %c0 = arith.constant 0 : index
    %c0_0 = arith.constant 0 : index
    %0 = vector.load %arg3[%c0, %c0_0] : memref<2x32xf32, #tpu.memory_space<vmem>>, vector<2x32xf32>
    %c0_1 = arith.constant 0 : index
    %c0_2 = arith.constant 0 : index
    %1 = vector.load %arg2[%c0_1, %c0_2] : memref<16x32xf32, #tpu.memory_space<vmem>>, vector<16x32xf32>
    %2 = vector.extract_strided_slice %0 {offsets = [0, 0], sizes = [1, 32], strides = [1, 1]} : vector<2x32xf32> to vector<1x32xf32>
    %3 = vector.extract_strided_slice %0 {offsets = [1, 0], sizes = [1, 32], strides = [1, 1]} : vector<2x32xf32> to vector<1x32xf32>
    %cst = arith.constant dense<0.000000e+00> : vector<16xf32>
    %4 = vector.multi_reduction <add>, %1, %cst [1] : vector<16x32xf32> to vector<16xf32>
    %5 = vector.shape_cast %4 : vector<16xf32> to vector<16x1xf32>
    %cst_3 = arith.constant 3.200000e+01 : f32
    %6 = vector.broadcast %cst_3 : f32 to vector<16x1xf32>
    %7 = arith.divf %5, %6 : vector<16x1xf32>
    %8 = vector.broadcast %7 : vector<16x1xf32> to vector<16x32xf32>
    %9 = arith.subf %1, %8 : vector<16x32xf32>
    %10 = vector.broadcast %7 : vector<16x1xf32> to vector<16x32xf32>
    %11 = arith.subf %1, %10 : vector<16x32xf32>
    %12 = arith.mulf %9, %11 : vector<16x32xf32>
    %cst_4 = arith.constant dense<0.000000e+00> : vector<16xf32>
    %13 = vector.multi_reduction <add>, %12, %cst_4 [1] : vector<16x32xf32> to vector<16xf32>
    %14 = vector.shape_cast %13 : vector<16xf32> to vector<16x1xf32>
    %cst_5 = arith.constant 3.200000e+01 : f32
    %15 = vector.broadcast %cst_5 : f32 to vector<16x1xf32>
    %16 = arith.divf %14, %15 : vector<16x1xf32>
    %17 = vector.broadcast %7 : vector<16x1xf32> to vector<16x32xf32>
    %18 = arith.subf %1, %17 : vector<16x32xf32>
    %cst_6 = arith.constant 9.99999974E-6 : f32
    %19 = vector.broadcast %cst_6 : f32 to vector<16x1xf32>
    %20 = arith.addf %16, %19 : vector<16x1xf32>
    %21 = math.rsqrt %20 : vector<16x1xf32>
    %22 = vector.broadcast %21 : vector<16x1xf32> to vector<16x32xf32>
    %23 = arith.mulf %18, %22 : vector<16x32xf32>
    %24 = vector.broadcast %2 : vector<1x32xf32> to vector<16x32xf32>
    %25 = arith.mulf %23, %24 : vector<16x32xf32>
    %26 = vector.broadcast %3 : vector<1x32xf32> to vector<16x32xf32>
    %27 = arith.addf %25, %26 : vector<16x32xf32>
    %c0_7 = arith.constant 0 : index
    %c0_8 = arith.constant 0 : index
    %28 = vector.load %arg1[%c0_7, %c0_8] : memref<16x16xf32, #tpu.memory_space<vmem>>, vector<16x16xf32>
    %29 = arith.truncf %27 : vector<16x32xf32> to vector<16x32xbf16>
    %c0_9 = arith.constant 0 : index
    %c0_10 = arith.constant 0 : index
    %c0_11 = arith.constant 0 : index
    %30 = vector.load %arg4[%c0_9, %c0_10, %c0_11] : memref<2x32x1152xbf16, #tpu.memory_space<vmem>>, vector<1x32x1152xbf16>
    %31 = vector.shape_cast %30 : vector<1x32x1152xbf16> to vector<32x1152xbf16>
    %cst_12 = arith.constant dense<0.000000e+00> : vector<16x1152xf32>
    %32 = tpu.matmul %29, %31, %cst_12 {dimension_numbers = #tpu.dot_dimension_numbers<[1], [0], [0], [1], [0, 0, 1, 1], [], []>} : vector<16x32xbf16>, vector<32x1152xbf16>, vector<16x1152xf32> -> vector<16x1152xf32>
    %c0_13 = arith.constant 0 : index
    %c0_14 = arith.constant 0 : index
    %c0_15 = arith.constant 0 : index
    %33 = vector.load %arg5[%c0_13, %c0_14, %c0_15] : memref<2x1x1152xf32, #tpu.memory_space<vmem>>, vector<1x1x1152xf32>
    %34 = vector.shape_cast %33 : vector<1x1x1152xf32> to vector<1x1152xf32>
    %35 = vector.broadcast %34 : vector<1x1152xf32> to vector<16x1152xf32>
    %36 = arith.addf %32, %35 : vector<16x1152xf32>
    %37 = arith.truncf %36 : vector<16x1152xf32> to vector<16x1152xbf16>
    %38 = vector.extract_strided_slice %37 {offsets = [0, 512], sizes = [16, 128], strides = [1, 1]} : vector<16x1152xbf16> to vector<16x128xbf16>
    %39 = vector.extract_strided_slice %37 {offsets = [0, 0], sizes = [16, 128], strides = [1, 1]} : vector<16x1152xbf16> to vector<16x128xbf16>
    %cst_16 = arith.constant dense<0.000000e+00> : vector<16x16xf32>
    %40 = tpu.matmul %39, %38, %cst_16 {dimension_numbers = #tpu.dot_dimension_numbers<[1], [1], [0], [0], [0, 0, 1, 0], [], []>} : vector<16x128xbf16>, vector<16x128xbf16>, vector<16x16xf32> -> vector<16x16xf32>
    %41 = arith.addf %40, %28 : vector<16x16xf32>
    %cst_17 = arith.constant dense<0xFF800000> : vector<16xf32>
    %42 = vector.multi_reduction <maximumf>, %41, %cst_17 [1] : vector<16x16xf32> to vector<16xf32>
    %43 = vector.shape_cast %42 : vector<16xf32> to vector<16x1xf32>
    %44 = vector.broadcast %43 : vector<16x1xf32> to vector<16x16xf32>
    %45 = arith.subf %41, %44 : vector<16x16xf32>
    %46 = math.exp %45 : vector<16x16xf32>
    %cst_18 = arith.constant dense<0.000000e+00> : vector<16xf32>
    %47 = vector.multi_reduction <add>, %46, %cst_18 [1] : vector<16x16xf32> to vector<16xf32>
    %48 = vector.shape_cast %47 : vector<16xf32> to vector<16x1xf32>
    %49 = tpu.reciprocal %48 {approx = true} : vector<16x1xf32> -> vector<16x1xf32>
    %50 = vector.broadcast %49 : vector<16x1xf32> to vector<16x16xf32>
    %51 = arith.mulf %46, %50 : vector<16x16xf32>
    %52 = vector.extract_strided_slice %37 {offsets = [0, 640], sizes = [16, 128], strides = [1, 1]} : vector<16x1152xbf16> to vector<16x128xbf16>
    %53 = arith.truncf %51 : vector<16x16xf32> to vector<16x16xbf16>
    %cst_19 = arith.constant dense<0.000000e+00> : vector<16x128xf32>
    %54 = tpu.matmul %53, %52, %cst_19 {dimension_numbers = #tpu.dot_dimension_numbers<[1], [0], [0], [1], [0, 0, 1, 1], [], []>} : vector<16x16xbf16>, vector<16x128xbf16>, vector<16x128xf32> -> vector<16x128xf32>
    %55 = vector.extract_strided_slice %37 {offsets = [0, 128], sizes = [16, 128], strides = [1, 1]} : vector<16x1152xbf16> to vector<16x128xbf16>
    %cst_20 = arith.constant dense<0.000000e+00> : vector<16x16xf32>
    %56 = tpu.matmul %55, %38, %cst_20 {dimension_numbers = #tpu.dot_dimension_numbers<[1], [1], [0], [0], [0, 0, 1, 0], [], []>} : vector<16x128xbf16>, vector<16x128xbf16>, vector<16x16xf32> -> vector<16x16xf32>
    %57 = arith.addf %56, %28 : vector<16x16xf32>
    %cst_21 = arith.constant dense<0xFF800000> : vector<16xf32>
    %58 = vector.multi_reduction <maximumf>, %57, %cst_21 [1] : vector<16x16xf32> to vector<16xf32>
    %59 = vector.shape_cast %58 : vector<16xf32> to vector<16x1xf32>
    %60 = vector.broadcast %59 : vector<16x1xf32> to vector<16x16xf32>
    %61 = arith.subf %57, %60 : vector<16x16xf32>
    %62 = math.exp %61 : vector<16x16xf32>
    %cst_22 = arith.constant dense<0.000000e+00> : vector<16xf32>
    %63 = vector.multi_reduction <add>, %62, %cst_22 [1] : vector<16x16xf32> to vector<16xf32>
    %64 = vector.shape_cast %63 : vector<16xf32> to vector<16x1xf32>
    %65 = tpu.reciprocal %64 {approx = true} : vector<16x1xf32> -> vector<16x1xf32>
    %66 = vector.broadcast %65 : vector<16x1xf32> to vector<16x16xf32>
    %67 = arith.mulf %62, %66 : vector<16x16xf32>
    %68 = vector.extract_strided_slice %37 {offsets = [0, 768], sizes = [16, 128], strides = [1, 1]} : vector<16x1152xbf16> to vector<16x128xbf16>
    %69 = arith.truncf %67 : vector<16x16xf32> to vector<16x16xbf16>
    %cst_23 = arith.constant dense<0.000000e+00> : vector<16x128xf32>
    %70 = tpu.matmul %69, %68, %cst_23 {dimension_numbers = #tpu.dot_dimension_numbers<[1], [0], [0], [1], [0, 0, 1, 1], [], []>} : vector<16x16xbf16>, vector<16x128xbf16>, vector<16x128xf32> -> vector<16x128xf32>
    %71 = arith.addf %54, %70 : vector<16x128xf32>
    %72 = vector.extract_strided_slice %37 {offsets = [0, 256], sizes = [16, 128], strides = [1, 1]} : vector<16x1152xbf16> to vector<16x128xbf16>
    %cst_24 = arith.constant dense<0.000000e+00> : vector<16x16xf32>
    %73 = tpu.matmul %72, %38, %cst_24 {dimension_numbers = #tpu.dot_dimension_numbers<[1], [1], [0], [0], [0, 0, 1, 0], [], []>} : vector<16x128xbf16>, vector<16x128xbf16>, vector<16x16xf32> -> vector<16x16xf32>
    %74 = arith.addf %73, %28 : vector<16x16xf32>
    %cst_25 = arith.constant dense<0xFF800000> : vector<16xf32>
    %75 = vector.multi_reduction <maximumf>, %74, %cst_25 [1] : vector<16x16xf32> to vector<16xf32>
    %76 = vector.shape_cast %75 : vector<16xf32> to vector<16x1xf32>
    %77 = vector.broadcast %76 : vector<16x1xf32> to vector<16x16xf32>
    %78 = arith.subf %74, %77 : vector<16x16xf32>
    %79 = math.exp %78 : vector<16x16xf32>
    %cst_26 = arith.constant dense<0.000000e+00> : vector<16xf32>
    %80 = vector.multi_reduction <add>, %79, %cst_26 [1] : vector<16x16xf32> to vector<16xf32>
    %81 = vector.shape_cast %80 : vector<16xf32> to vector<16x1xf32>
    %82 = tpu.reciprocal %81 {approx = true} : vector<16x1xf32> -> vector<16x1xf32>
    %83 = vector.broadcast %82 : vector<16x1xf32> to vector<16x16xf32>
    %84 = arith.mulf %79, %83 : vector<16x16xf32>
    %85 = vector.extract_strided_slice %37 {offsets = [0, 896], sizes = [16, 128], strides = [1, 1]} : vector<16x1152xbf16> to vector<16x128xbf16>
    %86 = arith.truncf %84 : vector<16x16xf32> to vector<16x16xbf16>
    %cst_27 = arith.constant dense<0.000000e+00> : vector<16x128xf32>
    %87 = tpu.matmul %86, %85, %cst_27 {dimension_numbers = #tpu.dot_dimension_numbers<[1], [0], [0], [1], [0, 0, 1, 1], [], []>} : vector<16x16xbf16>, vector<16x128xbf16>, vector<16x128xf32> -> vector<16x128xf32>
    %88 = arith.addf %71, %87 : vector<16x128xf32>
    %89 = vector.extract_strided_slice %37 {offsets = [0, 384], sizes = [16, 128], strides = [1, 1]} : vector<16x1152xbf16> to vector<16x128xbf16>
    %cst_28 = arith.constant dense<0.000000e+00> : vector<16x16xf32>
    %90 = tpu.matmul %89, %38, %cst_28 {dimension_numbers = #tpu.dot_dimension_numbers<[1], [1], [0], [0], [0, 0, 1, 0], [], []>} : vector<16x128xbf16>, vector<16x128xbf16>, vector<16x16xf32> -> vector<16x16xf32>
    %91 = arith.addf %90, %28 : vector<16x16xf32>
    %cst_29 = arith.constant dense<0xFF800000> : vector<16xf32>
    %92 = vector.multi_reduction <maximumf>, %91, %cst_29 [1] : vector<16x16xf32> to vector<16xf32>
    %93 = vector.shape_cast %92 : vector<16xf32> to vector<16x1xf32>
    %94 = vector.broadcast %93 : vector<16x1xf32> to vector<16x16xf32>
    %95 = arith.subf %91, %94 : vector<16x16xf32>
    %96 = math.exp %95 : vector<16x16xf32>
    %cst_30 = arith.constant dense<0.000000e+00> : vector<16xf32>
    %97 = vector.multi_reduction <add>, %96, %cst_30 [1] : vector<16x16xf32> to vector<16xf32>
    %98 = vector.shape_cast %97 : vector<16xf32> to vector<16x1xf32>
    %99 = tpu.reciprocal %98 {approx = true} : vector<16x1xf32> -> vector<16x1xf32>
    %100 = vector.broadcast %99 : vector<16x1xf32> to vector<16x16xf32>
    %101 = arith.mulf %96, %100 : vector<16x16xf32>
    %102 = vector.extract_strided_slice %37 {offsets = [0, 1024], sizes = [16, 128], strides = [1, 1]} : vector<16x1152xbf16> to vector<16x128xbf16>
    %103 = arith.truncf %101 : vector<16x16xf32> to vector<16x16xbf16>
    %cst_31 = arith.constant dense<0.000000e+00> : vector<16x128xf32>
    %104 = tpu.matmul %103, %102, %cst_31 {dimension_numbers = #tpu.dot_dimension_numbers<[1], [0], [0], [1], [0, 0, 1, 1], [], []>} : vector<16x16xbf16>, vector<16x128xbf16>, vector<16x128xf32> -> vector<16x128xf32>
    %105 = arith.addf %88, %104 : vector<16x128xf32>
    %106 = arith.truncf %105 : vector<16x128xf32> to vector<16x128xbf16>
    %c0_32 = arith.constant 0 : index
    %c0_33 = arith.constant 0 : index
    %c0_34 = arith.constant 0 : index
    %107 = vector.load %arg6[%c0_32, %c0_33, %c0_34] : memref<2x128x32xbf16, #tpu.memory_space<vmem>>, vector<1x128x32xbf16>
    %108 = vector.shape_cast %107 : vector<1x128x32xbf16> to vector<128x32xbf16>
    %cst_35 = arith.constant dense<0.000000e+00> : vector<16x32xf32>
    %109 = tpu.matmul %106, %108, %cst_35 {dimension_numbers = #tpu.dot_dimension_numbers<[1], [0], [0], [1], [0, 0, 1, 1], [], []>} : vector<16x128xbf16>, vector<128x32xbf16>, vector<16x32xf32> -> vector<16x32xf32>
    %c0_36 = arith.constant 0 : index
    %c0_37 = arith.constant 0 : index
    %c0_38 = arith.constant 0 : index
    %110 = vector.load %arg7[%c0_36, %c0_37, %c0_38] : memref<2x1x32xf32, #tpu.memory_space<vmem>>, vector<1x1x32xf32>
    %111 = vector.shape_cast %110 : vector<1x1x32xf32> to vector<1x32xf32>
    %112 = vector.broadcast %111 : vector<1x32xf32> to vector<16x32xf32>
    %113 = arith.addf %109, %112 : vector<16x32xf32>
    %c0_39 = arith.constant 0 : index
    %c0_40 = arith.constant 0 : index
    %c0_41 = arith.constant 0 : index
    %114 = vector.load %arg12[%c0_39, %c0_40, %c0_41] : memref<2x2x32xf32, #tpu.memory_space<vmem>>, vector<1x2x32xf32>
    %115 = vector.shape_cast %114 : vector<1x2x32xf32> to vector<2x32xf32>
    %116 = arith.addf %113, %27 : vector<16x32xf32>
    %117 = vector.extract_strided_slice %115 {offsets = [0, 0], sizes = [1, 32], strides = [1, 1]} : vector<2x32xf32> to vector<1x32xf32>
    %118 = vector.extract_strided_slice %115 {offsets = [1, 0], sizes = [1, 32], strides = [1, 1]} : vector<2x32xf32> to vector<1x32xf32>
    %cst_42 = arith.constant dense<0.000000e+00> : vector<16xf32>
    %119 = vector.multi_reduction <add>, %116, %cst_42 [1] : vector<16x32xf32> to vector<16xf32>
    %120 = vector.shape_cast %119 : vector<16xf32> to vector<16x1xf32>
    %cst_43 = arith.constant 3.200000e+01 : f32
    %121 = vector.broadcast %cst_43 : f32 to vector<16x1xf32>
    %122 = arith.divf %120, %121 : vector<16x1xf32>
    %123 = vector.broadcast %122 : vector<16x1xf32> to vector<16x32xf32>
    %124 = arith.subf %116, %123 : vector<16x32xf32>
    %125 = vector.broadcast %122 : vector<16x1xf32> to vector<16x32xf32>
    %126 = arith.subf %116, %125 : vector<16x32xf32>
    %127 = arith.mulf %124, %126 : vector<16x32xf32>
    %cst_44 = arith.constant dense<0.000000e+00> : vector<16xf32>
    %128 = vector.multi_reduction <add>, %127, %cst_44 [1] : vector<16x32xf32> to vector<16xf32>
    %129 = vector.shape_cast %128 : vector<16xf32> to vector<16x1xf32>
    %cst_45 = arith.constant 3.200000e+01 : f32
    %130 = vector.broadcast %cst_45 : f32 to vector<16x1xf32>
    %131 = arith.divf %129, %130 : vector<16x1xf32>
    %132 = vector.broadcast %122 : vector<16x1xf32> to vector<16x32xf32>
    %133 = arith.subf %116, %132 : vector<16x32xf32>
    %cst_46 = arith.constant 9.99999974E-6 : f32
    %134 = vector.broadcast %cst_46 : f32 to vector<16x1xf32>
    %135 = arith.addf %131, %134 : vector<16x1xf32>
    %136 = math.rsqrt %135 : vector<16x1xf32>
    %137 = vector.broadcast %136 : vector<16x1xf32> to vector<16x32xf32>
    %138 = arith.mulf %133, %137 : vector<16x32xf32>
    %139 = vector.broadcast %117 : vector<1x32xf32> to vector<16x32xf32>
    %140 = arith.mulf %138, %139 : vector<16x32xf32>
    %141 = vector.broadcast %118 : vector<1x32xf32> to vector<16x32xf32>
    %142 = arith.addf %140, %141 : vector<16x32xf32>
    %143 = arith.truncf %142 : vector<16x32xf32> to vector<16x32xbf16>
    %c0_47 = arith.constant 0 : index
    %c0_48 = arith.constant 0 : index
    %c0_49 = arith.constant 0 : index
    %144 = vector.load %arg8[%c0_47, %c0_48, %c0_49] : memref<2x32x64xbf16, #tpu.memory_space<vmem>>, vector<1x32x64xbf16>
    %145 = vector.shape_cast %144 : vector<1x32x64xbf16> to vector<32x64xbf16>
    %cst_50 = arith.constant dense<0.000000e+00> : vector<16x64xf32>
    %146 = tpu.matmul %143, %145, %cst_50 {dimension_numbers = #tpu.dot_dimension_numbers<[1], [0], [0], [1], [0, 0, 1, 1], [], []>} : vector<16x32xbf16>, vector<32x64xbf16>, vector<16x64xf32> -> vector<16x64xf32>
    %c0_51 = arith.constant 0 : index
    %c0_52 = arith.constant 0 : index
    %c0_53 = arith.constant 0 : index
    %147 = vector.load %arg9[%c0_51, %c0_52, %c0_53] : memref<2x1x64xf32, #tpu.memory_space<vmem>>, vector<1x1x64xf32>
    %148 = vector.shape_cast %147 : vector<1x1x64xf32> to vector<1x64xf32>
    %149 = vector.broadcast %148 : vector<1x64xf32> to vector<16x64xf32>
    %150 = arith.addf %146, %149 : vector<16x64xf32>
    %cst_54 = arith.constant 5.000000e-01 : f32
    %151 = vector.broadcast %cst_54 : f32 to vector<16x64xf32>
    %152 = arith.mulf %151, %150 : vector<16x64xf32>
    %cst_55 = arith.constant 0.707106769 : f32
    %153 = vector.broadcast %cst_55 : f32 to vector<16x64xf32>
    %154 = arith.mulf %150, %153 : vector<16x64xf32>
    %155 = math.erf %154 : vector<16x64xf32>
    %cst_56 = arith.constant 1.000000e+00 : f32
    %156 = vector.broadcast %cst_56 : f32 to vector<16x64xf32>
    %157 = arith.addf %156, %155 : vector<16x64xf32>
    %158 = arith.mulf %152, %157 : vector<16x64xf32>
    %159 = arith.truncf %158 : vector<16x64xf32> to vector<16x64xbf16>
    %c0_57 = arith.constant 0 : index
    %c0_58 = arith.constant 0 : index
    %c0_59 = arith.constant 0 : index
    %160 = vector.load %arg10[%c0_57, %c0_58, %c0_59] : memref<2x64x32xbf16, #tpu.memory_space<vmem>>, vector<1x64x32xbf16>
    %161 = vector.shape_cast %160 : vector<1x64x32xbf16> to vector<64x32xbf16>
    %cst_60 = arith.constant dense<0.000000e+00> : vector<16x32xf32>
    %162 = tpu.matmul %159, %161, %cst_60 {dimension_numbers = #tpu.dot_dimension_numbers<[1], [0], [0], [1], [0, 0, 1, 1], [], []>} : vector<16x64xbf16>, vector<64x32xbf16>, vector<16x32xf32> -> vector<16x32xf32>
    %c0_61 = arith.constant 0 : index
    %c0_62 = arith.constant 0 : index
    %c0_63 = arith.constant 0 : index
    %163 = vector.load %arg11[%c0_61, %c0_62, %c0_63] : memref<2x1x32xf32, #tpu.memory_space<vmem>>, vector<1x1x32xf32>
    %164 = vector.shape_cast %163 : vector<1x1x32xf32> to vector<1x32xf32>
    %165 = vector.broadcast %164 : vector<1x32xf32> to vector<16x32xf32>
    %166 = arith.addf %162, %165 : vector<16x32xf32>
    %c0_64 = arith.constant 0 : index
    %c0_65 = arith.constant 0 : index
    %c0_66 = arith.constant 0 : index
    %167 = vector.load %arg13[%c0_64, %c0_65, %c0_66] : memref<2x2x32xf32, #tpu.memory_space<vmem>>, vector<1x2x32xf32>
    %168 = vector.shape_cast %167 : vector<1x2x32xf32> to vector<2x32xf32>
    %169 = arith.addf %166, %142 : vector<16x32xf32>
    %170 = vector.extract_strided_slice %168 {offsets = [0, 0], sizes = [1, 32], strides = [1, 1]} : vector<2x32xf32> to vector<1x32xf32>
    %171 = vector.extract_strided_slice %168 {offsets = [1, 0], sizes = [1, 32], strides = [1, 1]} : vector<2x32xf32> to vector<1x32xf32>
    %cst_67 = arith.constant dense<0.000000e+00> : vector<16xf32>
    %172 = vector.multi_reduction <add>, %169, %cst_67 [1] : vector<16x32xf32> to vector<16xf32>
    %173 = vector.shape_cast %172 : vector<16xf32> to vector<16x1xf32>
    %cst_68 = arith.constant 3.200000e+01 : f32
    %174 = vector.broadcast %cst_68 : f32 to vector<16x1xf32>
    %175 = arith.divf %173, %174 : vector<16x1xf32>
    %176 = vector.broadcast %175 : vector<16x1xf32> to vector<16x32xf32>
    %177 = arith.subf %169, %176 : vector<16x32xf32>
    %178 = vector.broadcast %175 : vector<16x1xf32> to vector<16x32xf32>
    %179 = arith.subf %169, %178 : vector<16x32xf32>
    %180 = arith.mulf %177, %179 : vector<16x32xf32>
    %cst_69 = arith.constant dense<0.000000e+00> : vector<16xf32>
    %181 = vector.multi_reduction <add>, %180, %cst_69 [1] : vector<16x32xf32> to vector<16xf32>
    %182 = vector.shape_cast %181 : vector<16xf32> to vector<16x1xf32>
    %cst_70 = arith.constant 3.200000e+01 : f32
    %183 = vector.broadcast %cst_70 : f32 to vector<16x1xf32>
    %184 = arith.divf %182, %183 : vector<16x1xf32>
    %185 = vector.broadcast %175 : vector<16x1xf32> to vector<16x32xf32>
    %186 = arith.subf %169, %185 : vector<16x32xf32>
    %cst_71 = arith.constant 9.99999974E-6 : f32
    %187 = vector.broadcast %cst_71 : f32 to vector<16x1xf32>
    %188 = arith.addf %184, %187 : vector<16x1xf32>
    %189 = math.rsqrt %188 : vector<16x1xf32>
    %190 = vector.broadcast %189 : vector<16x1xf32> to vector<16x32xf32>
    %191 = arith.mulf %186, %190 : vector<16x32xf32>
    %192 = vector.broadcast %170 : vector<1x32xf32> to vector<16x32xf32>
    %193 = arith.mulf %191, %192 : vector<16x32xf32>
    %194 = vector.broadcast %171 : vector<1x32xf32> to vector<16x32xf32>
    %195 = arith.addf %193, %194 : vector<16x32xf32>
    %196 = arith.truncf %195 : vector<16x32xf32> to vector<16x32xbf16>
    %c1 = arith.constant 1 : index
    %c0_72 = arith.constant 0 : index
    %c0_73 = arith.constant 0 : index
    %197 = vector.load %arg4[%c1, %c0_72, %c0_73] : memref<2x32x1152xbf16, #tpu.memory_space<vmem>>, vector<1x32x1152xbf16>
    %198 = vector.shape_cast %197 : vector<1x32x1152xbf16> to vector<32x1152xbf16>
    %cst_74 = arith.constant dense<0.000000e+00> : vector<16x1152xf32>
    %199 = tpu.matmul %196, %198, %cst_74 {dimension_numbers = #tpu.dot_dimension_numbers<[1], [0], [0], [1], [0, 0, 1, 1], [], []>} : vector<16x32xbf16>, vector<32x1152xbf16>, vector<16x1152xf32> -> vector<16x1152xf32>
    %c1_75 = arith.constant 1 : index
    %c0_76 = arith.constant 0 : index
    %c0_77 = arith.constant 0 : index
    %200 = vector.load %arg5[%c1_75, %c0_76, %c0_77] : memref<2x1x1152xf32, #tpu.memory_space<vmem>>, vector<1x1x1152xf32>
    %201 = vector.shape_cast %200 : vector<1x1x1152xf32> to vector<1x1152xf32>
    %202 = vector.broadcast %201 : vector<1x1152xf32> to vector<16x1152xf32>
    %203 = arith.addf %199, %202 : vector<16x1152xf32>
    %204 = arith.truncf %203 : vector<16x1152xf32> to vector<16x1152xbf16>
    %205 = vector.extract_strided_slice %204 {offsets = [0, 512], sizes = [16, 128], strides = [1, 1]} : vector<16x1152xbf16> to vector<16x128xbf16>
    %206 = vector.extract_strided_slice %204 {offsets = [0, 0], sizes = [16, 128], strides = [1, 1]} : vector<16x1152xbf16> to vector<16x128xbf16>
    %cst_78 = arith.constant dense<0.000000e+00> : vector<16x16xf32>
    %207 = tpu.matmul %206, %205, %cst_78 {dimension_numbers = #tpu.dot_dimension_numbers<[1], [1], [0], [0], [0, 0, 1, 0], [], []>} : vector<16x128xbf16>, vector<16x128xbf16>, vector<16x16xf32> -> vector<16x16xf32>
    %208 = arith.addf %207, %28 : vector<16x16xf32>
    %cst_79 = arith.constant dense<0xFF800000> : vector<16xf32>
    %209 = vector.multi_reduction <maximumf>, %208, %cst_79 [1] : vector<16x16xf32> to vector<16xf32>
    %210 = vector.shape_cast %209 : vector<16xf32> to vector<16x1xf32>
    %211 = vector.broadcast %210 : vector<16x1xf32> to vector<16x16xf32>
    %212 = arith.subf %208, %211 : vector<16x16xf32>
    %213 = math.exp %212 : vector<16x16xf32>
    %cst_80 = arith.constant dense<0.000000e+00> : vector<16xf32>
    %214 = vector.multi_reduction <add>, %213, %cst_80 [1] : vector<16x16xf32> to vector<16xf32>
    %215 = vector.shape_cast %214 : vector<16xf32> to vector<16x1xf32>
    %216 = tpu.reciprocal %215 {approx = true} : vector<16x1xf32> -> vector<16x1xf32>
    %217 = vector.broadcast %216 : vector<16x1xf32> to vector<16x16xf32>
    %218 = arith.mulf %213, %217 : vector<16x16xf32>
    %219 = vector.extract_strided_slice %204 {offsets = [0, 640], sizes = [16, 128], strides = [1, 1]} : vector<16x1152xbf16> to vector<16x128xbf16>
    %220 = arith.truncf %218 : vector<16x16xf32> to vector<16x16xbf16>
    %cst_81 = arith.constant dense<0.000000e+00> : vector<16x128xf32>
    %221 = tpu.matmul %220, %219, %cst_81 {dimension_numbers = #tpu.dot_dimension_numbers<[1], [0], [0], [1], [0, 0, 1, 1], [], []>} : vector<16x16xbf16>, vector<16x128xbf16>, vector<16x128xf32> -> vector<16x128xf32>
    %222 = vector.extract_strided_slice %204 {offsets = [0, 128], sizes = [16, 128], strides = [1, 1]} : vector<16x1152xbf16> to vector<16x128xbf16>
    %cst_82 = arith.constant dense<0.000000e+00> : vector<16x16xf32>
    %223 = tpu.matmul %222, %205, %cst_82 {dimension_numbers = #tpu.dot_dimension_numbers<[1], [1], [0], [0], [0, 0, 1, 0], [], []>} : vector<16x128xbf16>, vector<16x128xbf16>, vector<16x16xf32> -> vector<16x16xf32>
    %224 = arith.addf %223, %28 : vector<16x16xf32>
    %cst_83 = arith.constant dense<0xFF800000> : vector<16xf32>
    %225 = vector.multi_reduction <maximumf>, %224, %cst_83 [1] : vector<16x16xf32> to vector<16xf32>
    %226 = vector.shape_cast %225 : vector<16xf32> to vector<16x1xf32>
    %227 = vector.broadcast %226 : vector<16x1xf32> to vector<16x16xf32>
    %228 = arith.subf %224, %227 : vector<16x16xf32>
    %229 = math.exp %228 : vector<16x16xf32>
    %cst_84 = arith.constant dense<0.000000e+00> : vector<16xf32>
    %230 = vector.multi_reduction <add>, %229, %cst_84 [1] : vector<16x16xf32> to vector<16xf32>
    %231 = vector.shape_cast %230 : vector<16xf32> to vector<16x1xf32>
    %232 = tpu.reciprocal %231 {approx = true} : vector<16x1xf32> -> vector<16x1xf32>
    %233 = vector.broadcast %232 : vector<16x1xf32> to vector<16x16xf32>
    %234 = arith.mulf %229, %233 : vector<16x16xf32>
    %235 = vector.extract_strided_slice %204 {offsets = [0, 768], sizes = [16, 128], strides = [1, 1]} : vector<16x1152xbf16> to vector<16x128xbf16>
    %236 = arith.truncf %234 : vector<16x16xf32> to vector<16x16xbf16>
    %cst_85 = arith.constant dense<0.000000e+00> : vector<16x128xf32>
    %237 = tpu.matmul %236, %235, %cst_85 {dimension_numbers = #tpu.dot_dimension_numbers<[1], [0], [0], [1], [0, 0, 1, 1], [], []>} : vector<16x16xbf16>, vector<16x128xbf16>, vector<16x128xf32> -> vector<16x128xf32>
    %238 = arith.addf %221, %237 : vector<16x128xf32>
    %239 = vector.extract_strided_slice %204 {offsets = [0, 256], sizes = [16, 128], strides = [1, 1]} : vector<16x1152xbf16> to vector<16x128xbf16>
    %cst_86 = arith.constant dense<0.000000e+00> : vector<16x16xf32>
    %240 = tpu.matmul %239, %205, %cst_86 {dimension_numbers = #tpu.dot_dimension_numbers<[1], [1], [0], [0], [0, 0, 1, 0], [], []>} : vector<16x128xbf16>, vector<16x128xbf16>, vector<16x16xf32> -> vector<16x16xf32>
    %241 = arith.addf %240, %28 : vector<16x16xf32>
    %cst_87 = arith.constant dense<0xFF800000> : vector<16xf32>
    %242 = vector.multi_reduction <maximumf>, %241, %cst_87 [1] : vector<16x16xf32> to vector<16xf32>
    %243 = vector.shape_cast %242 : vector<16xf32> to vector<16x1xf32>
    %244 = vector.broadcast %243 : vector<16x1xf32> to vector<16x16xf32>
    %245 = arith.subf %241, %244 : vector<16x16xf32>
    %246 = math.exp %245 : vector<16x16xf32>
    %cst_88 = arith.constant dense<0.000000e+00> : vector<16xf32>
    %247 = vector.multi_reduction <add>, %246, %cst_88 [1] : vector<16x16xf32> to vector<16xf32>
    %248 = vector.shape_cast %247 : vector<16xf32> to vector<16x1xf32>
    %249 = tpu.reciprocal %248 {approx = true} : vector<16x1xf32> -> vector<16x1xf32>
    %250 = vector.broadcast %249 : vector<16x1xf32> to vector<16x16xf32>
    %251 = arith.mulf %246, %250 : vector<16x16xf32>
    %252 = vector.extract_strided_slice %204 {offsets = [0, 896], sizes = [16, 128], strides = [1, 1]} : vector<16x1152xbf16> to vector<16x128xbf16>
    %253 = arith.truncf %251 : vector<16x16xf32> to vector<16x16xbf16>
    %cst_89 = arith.constant dense<0.000000e+00> : vector<16x128xf32>
    %254 = tpu.matmul %253, %252, %cst_89 {dimension_numbers = #tpu.dot_dimension_numbers<[1], [0], [0], [1], [0, 0, 1, 1], [], []>} : vector<16x16xbf16>, vector<16x128xbf16>, vector<16x128xf32> -> vector<16x128xf32>
    %255 = arith.addf %238, %254 : vector<16x128xf32>
    %256 = vector.extract_strided_slice %204 {offsets = [0, 384], sizes = [16, 128], strides = [1, 1]} : vector<16x1152xbf16> to vector<16x128xbf16>
    %cst_90 = arith.constant dense<0.000000e+00> : vector<16x16xf32>
    %257 = tpu.matmul %256, %205, %cst_90 {dimension_numbers = #tpu.dot_dimension_numbers<[1], [1], [0], [0], [0, 0, 1, 0], [], []>} : vector<16x128xbf16>, vector<16x128xbf16>, vector<16x16xf32> -> vector<16x16xf32>
    %258 = arith.addf %257, %28 : vector<16x16xf32>
    %cst_91 = arith.constant dense<0xFF800000> : vector<16xf32>
    %259 = vector.multi_reduction <maximumf>, %258, %cst_91 [1] : vector<16x16xf32> to vector<16xf32>
    %260 = vector.shape_cast %259 : vector<16xf32> to vector<16x1xf32>
    %261 = vector.broadcast %260 : vector<16x1xf32> to vector<16x16xf32>
    %262 = arith.subf %258, %261 : vector<16x16xf32>
    %263 = math.exp %262 : vector<16x16xf32>
    %cst_92 = arith.constant dense<0.000000e+00> : vector<16xf32>
    %264 = vector.multi_reduction <add>, %263, %cst_92 [1] : vector<16x16xf32> to vector<16xf32>
    %265 = vector.shape_cast %264 : vector<16xf32> to vector<16x1xf32>
    %266 = tpu.reciprocal %265 {approx = true} : vector<16x1xf32> -> vector<16x1xf32>
    %267 = vector.broadcast %266 : vector<16x1xf32> to vector<16x16xf32>
    %268 = arith.mulf %263, %267 : vector<16x16xf32>
    %269 = vector.extract_strided_slice %204 {offsets = [0, 1024], sizes = [16, 128], strides = [1, 1]} : vector<16x1152xbf16> to vector<16x128xbf16>
    %270 = arith.truncf %268 : vector<16x16xf32> to vector<16x16xbf16>
    %cst_93 = arith.constant dense<0.000000e+00> : vector<16x128xf32>
    %271 = tpu.matmul %270, %269, %cst_93 {dimension_numbers = #tpu.dot_dimension_numbers<[1], [0], [0], [1], [0, 0, 1, 1], [], []>} : vector<16x16xbf16>, vector<16x128xbf16>, vector<16x128xf32> -> vector<16x128xf32>
    %272 = arith.addf %255, %271 : vector<16x128xf32>
    %273 = arith.truncf %272 : vector<16x128xf32> to vector<16x128xbf16>
    %c1_94 = arith.constant 1 : index
    %c0_95 = arith.constant 0 : index
    %c0_96 = arith.constant 0 : index
    %274 = vector.load %arg6[%c1_94, %c0_95, %c0_96] : memref<2x128x32xbf16, #tpu.memory_space<vmem>>, vector<1x128x32xbf16>
    %275 = vector.shape_cast %274 : vector<1x128x32xbf16> to vector<128x32xbf16>
    %cst_97 = arith.constant dense<0.000000e+00> : vector<16x32xf32>
    %276 = tpu.matmul %273, %275, %cst_97 {dimension_numbers = #tpu.dot_dimension_numbers<[1], [0], [0], [1], [0, 0, 1, 1], [], []>} : vector<16x128xbf16>, vector<128x32xbf16>, vector<16x32xf32> -> vector<16x32xf32>
    %c1_98 = arith.constant 1 : index
    %c0_99 = arith.constant 0 : index
    %c0_100 = arith.constant 0 : index
    %277 = vector.load %arg7[%c1_98, %c0_99, %c0_100] : memref<2x1x32xf32, #tpu.memory_space<vmem>>, vector<1x1x32xf32>
    %278 = vector.shape_cast %277 : vector<1x1x32xf32> to vector<1x32xf32>
    %279 = vector.broadcast %278 : vector<1x32xf32> to vector<16x32xf32>
    %280 = arith.addf %276, %279 : vector<16x32xf32>
    %c1_101 = arith.constant 1 : index
    %c0_102 = arith.constant 0 : index
    %c0_103 = arith.constant 0 : index
    %281 = vector.load %arg12[%c1_101, %c0_102, %c0_103] : memref<2x2x32xf32, #tpu.memory_space<vmem>>, vector<1x2x32xf32>
    %282 = vector.shape_cast %281 : vector<1x2x32xf32> to vector<2x32xf32>
    %283 = arith.addf %280, %195 : vector<16x32xf32>
    %284 = vector.extract_strided_slice %282 {offsets = [0, 0], sizes = [1, 32], strides = [1, 1]} : vector<2x32xf32> to vector<1x32xf32>
    %285 = vector.extract_strided_slice %282 {offsets = [1, 0], sizes = [1, 32], strides = [1, 1]} : vector<2x32xf32> to vector<1x32xf32>
    %cst_104 = arith.constant dense<0.000000e+00> : vector<16xf32>
    %286 = vector.multi_reduction <add>, %283, %cst_104 [1] : vector<16x32xf32> to vector<16xf32>
    %287 = vector.shape_cast %286 : vector<16xf32> to vector<16x1xf32>
    %cst_105 = arith.constant 3.200000e+01 : f32
    %288 = vector.broadcast %cst_105 : f32 to vector<16x1xf32>
    %289 = arith.divf %287, %288 : vector<16x1xf32>
    %290 = vector.broadcast %289 : vector<16x1xf32> to vector<16x32xf32>
    %291 = arith.subf %283, %290 : vector<16x32xf32>
    %292 = vector.broadcast %289 : vector<16x1xf32> to vector<16x32xf32>
    %293 = arith.subf %283, %292 : vector<16x32xf32>
    %294 = arith.mulf %291, %293 : vector<16x32xf32>
    %cst_106 = arith.constant dense<0.000000e+00> : vector<16xf32>
    %295 = vector.multi_reduction <add>, %294, %cst_106 [1] : vector<16x32xf32> to vector<16xf32>
    %296 = vector.shape_cast %295 : vector<16xf32> to vector<16x1xf32>
    %cst_107 = arith.constant 3.200000e+01 : f32
    %297 = vector.broadcast %cst_107 : f32 to vector<16x1xf32>
    %298 = arith.divf %296, %297 : vector<16x1xf32>
    %299 = vector.broadcast %289 : vector<16x1xf32> to vector<16x32xf32>
    %300 = arith.subf %283, %299 : vector<16x32xf32>
    %cst_108 = arith.constant 9.99999974E-6 : f32
    %301 = vector.broadcast %cst_108 : f32 to vector<16x1xf32>
    %302 = arith.addf %298, %301 : vector<16x1xf32>
    %303 = math.rsqrt %302 : vector<16x1xf32>
    %304 = vector.broadcast %303 : vector<16x1xf32> to vector<16x32xf32>
    %305 = arith.mulf %300, %304 : vector<16x32xf32>
    %306 = vector.broadcast %284 : vector<1x32xf32> to vector<16x32xf32>
    %307 = arith.mulf %305, %306 : vector<16x32xf32>
    %308 = vector.broadcast %285 : vector<1x32xf32> to vector<16x32xf32>
    %309 = arith.addf %307, %308 : vector<16x32xf32>
    %310 = arith.truncf %309 : vector<16x32xf32> to vector<16x32xbf16>
    %c1_109 = arith.constant 1 : index
    %c0_110 = arith.constant 0 : index
    %c0_111 = arith.constant 0 : index
    %311 = vector.load %arg8[%c1_109, %c0_110, %c0_111] : memref<2x32x64xbf16, #tpu.memory_space<vmem>>, vector<1x32x64xbf16>
    %312 = vector.shape_cast %311 : vector<1x32x64xbf16> to vector<32x64xbf16>
    %cst_112 = arith.constant dense<0.000000e+00> : vector<16x64xf32>
    %313 = tpu.matmul %310, %312, %cst_112 {dimension_numbers = #tpu.dot_dimension_numbers<[1], [0], [0], [1], [0, 0, 1, 1], [], []>} : vector<16x32xbf16>, vector<32x64xbf16>, vector<16x64xf32> -> vector<16x64xf32>
    %c1_113 = arith.constant 1 : index
    %c0_114 = arith.constant 0 : index
    %c0_115 = arith.constant 0 : index
    %314 = vector.load %arg9[%c1_113, %c0_114, %c0_115] : memref<2x1x64xf32, #tpu.memory_space<vmem>>, vector<1x1x64xf32>
    %315 = vector.shape_cast %314 : vector<1x1x64xf32> to vector<1x64xf32>
    %316 = vector.broadcast %315 : vector<1x64xf32> to vector<16x64xf32>
    %317 = arith.addf %313, %316 : vector<16x64xf32>
    %cst_116 = arith.constant 5.000000e-01 : f32
    %318 = vector.broadcast %cst_116 : f32 to vector<16x64xf32>
    %319 = arith.mulf %318, %317 : vector<16x64xf32>
    %cst_117 = arith.constant 0.707106769 : f32
    %320 = vector.broadcast %cst_117 : f32 to vector<16x64xf32>
    %321 = arith.mulf %317, %320 : vector<16x64xf32>
    %322 = math.erf %321 : vector<16x64xf32>
    %cst_118 = arith.constant 1.000000e+00 : f32
    %323 = vector.broadcast %cst_118 : f32 to vector<16x64xf32>
    %324 = arith.addf %323, %322 : vector<16x64xf32>
    %325 = arith.mulf %319, %324 : vector<16x64xf32>
    %326 = arith.truncf %325 : vector<16x64xf32> to vector<16x64xbf16>
    %c1_119 = arith.constant 1 : index
    %c0_120 = arith.constant 0 : index
    %c0_121 = arith.constant 0 : index
    %327 = vector.load %arg10[%c1_119, %c0_120, %c0_121] : memref<2x64x32xbf16, #tpu.memory_space<vmem>>, vector<1x64x32xbf16>
    %328 = vector.shape_cast %327 : vector<1x64x32xbf16> to vector<64x32xbf16>
    %cst_122 = arith.constant dense<0.000000e+00> : vector<16x32xf32>
    %329 = tpu.matmul %326, %328, %cst_122 {dimension_numbers = #tpu.dot_dimension_numbers<[1], [0], [0], [1], [0, 0, 1, 1], [], []>} : vector<16x64xbf16>, vector<64x32xbf16>, vector<16x32xf32> -> vector<16x32xf32>
    %c1_123 = arith.constant 1 : index
    %c0_124 = arith.constant 0 : index
    %c0_125 = arith.constant 0 : index
    %330 = vector.load %arg11[%c1_123, %c0_124, %c0_125] : memref<2x1x32xf32, #tpu.memory_space<vmem>>, vector<1x1x32xf32>
    %331 = vector.shape_cast %330 : vector<1x1x32xf32> to vector<1x32xf32>
    %332 = vector.broadcast %331 : vector<1x32xf32> to vector<16x32xf32>
    %333 = arith.addf %329, %332 : vector<16x32xf32>
    %c1_126 = arith.constant 1 : index
    %c0_127 = arith.constant 0 : index
    %c0_128 = arith.constant 0 : index
    %334 = vector.load %arg13[%c1_126, %c0_127, %c0_128] : memref<2x2x32xf32, #tpu.memory_space<vmem>>, vector<1x2x32xf32>
    %335 = vector.shape_cast %334 : vector<1x2x32xf32> to vector<2x32xf32>
    %336 = arith.addf %333, %309 : vector<16x32xf32>
    %337 = vector.extract_strided_slice %335 {offsets = [0, 0], sizes = [1, 32], strides = [1, 1]} : vector<2x32xf32> to vector<1x32xf32>
    %338 = vector.extract_strided_slice %335 {offsets = [1, 0], sizes = [1, 32], strides = [1, 1]} : vector<2x32xf32> to vector<1x32xf32>
    %cst_129 = arith.constant dense<0.000000e+00> : vector<16xf32>
    %339 = vector.multi_reduction <add>, %336, %cst_129 [1] : vector<16x32xf32> to vector<16xf32>
    %340 = vector.shape_cast %339 : vector<16xf32> to vector<16x1xf32>
    %cst_130 = arith.constant 3.200000e+01 : f32
    %341 = vector.broadcast %cst_130 : f32 to vector<16x1xf32>
    %342 = arith.divf %340, %341 : vector<16x1xf32>
    %343 = vector.broadcast %342 : vector<16x1xf32> to vector<16x32xf32>
    %344 = arith.subf %336, %343 : vector<16x32xf32>
    %345 = vector.broadcast %342 : vector<16x1xf32> to vector<16x32xf32>
    %346 = arith.subf %336, %345 : vector<16x32xf32>
    %347 = arith.mulf %344, %346 : vector<16x32xf32>
    %cst_131 = arith.constant dense<0.000000e+00> : vector<16xf32>
    %348 = vector.multi_reduction <add>, %347, %cst_131 [1] : vector<16x32xf32> to vector<16xf32>
    %349 = vector.shape_cast %348 : vector<16xf32> to vector<16x1xf32>
    %cst_132 = arith.constant 3.200000e+01 : f32
    %350 = vector.broadcast %cst_132 : f32 to vector<16x1xf32>
    %351 = arith.divf %349, %350 : vector<16x1xf32>
    %352 = vector.broadcast %342 : vector<16x1xf32> to vector<16x32xf32>
    %353 = arith.subf %336, %352 : vector<16x32xf32>
    %cst_133 = arith.constant 9.99999974E-6 : f32
    %354 = vector.broadcast %cst_133 : f32 to vector<16x1xf32>
    %355 = arith.addf %351, %354 : vector<16x1xf32>
    %356 = math.rsqrt %355 : vector<16x1xf32>
    %357 = vector.broadcast %356 : vector<16x1xf32> to vector<16x32xf32>
    %358 = arith.mulf %353, %357 : vector<16x32xf32>
    %359 = vector.broadcast %337 : vector<1x32xf32> to vector<16x32xf32>
    %360 = arith.mulf %358, %359 : vector<16x32xf32>
    %361 = vector.broadcast %338 : vector<1x32xf32> to vector<16x32xf32>
    %362 = arith.addf %360, %361 : vector<16x32xf32>
    %c0_134 = arith.constant 0 : index
    %c0_135 = arith.constant 0 : index
    %363 = vector.load %arg0[%c0_134, %c0_135] : memref<2x16xf32, #tpu.memory_space<vmem>>, vector<2x16xf32>
    %cst_136 = arith.constant dense<0.000000e+00> : vector<2x32xf32>
    %364 = tpu.matmul %363, %362, %cst_136 {dimension_numbers = #tpu.dot_dimension_numbers<[1], [0], [0], [1], [0, 0, 1, 1], [], []>} : vector<2x16xf32>, vector<16x32xf32>, vector<2x32xf32> -> vector<2x32xf32>
    %365 = arith.truncf %364 : vector<2x32xf32> to vector<2x32xbf16>
    %c0_137 = arith.constant 0 : index
    %c0_138 = arith.constant 0 : index
    %366 = vector.load %arg14[%c0_137, %c0_138] : memref<32x32xbf16, #tpu.memory_space<vmem>>, vector<32x32xbf16>
    %cst_139 = arith.constant dense<0.000000e+00> : vector<2x32xf32>
    %367 = tpu.matmul %365, %366, %cst_139 {dimension_numbers = #tpu.dot_dimension_numbers<[1], [0], [0], [1], [0, 0, 1, 1], [], []>} : vector<2x32xbf16>, vector<32x32xbf16>, vector<2x32xf32> -> vector<2x32xf32>
    %c0_140 = arith.constant 0 : index
    %c0_141 = arith.constant 0 : index
    %368 = vector.load %arg15[%c0_140, %c0_141] : memref<1x32xf32, #tpu.memory_space<vmem>>, vector<1x32xf32>
    %369 = vector.broadcast %368 : vector<1x32xf32> to vector<2x32xf32>
    %370 = arith.addf %367, %369 : vector<2x32xf32>
    %371 = math.tanh %370 : vector<2x32xf32>
    %372 = arith.truncf %371 : vector<2x32xf32> to vector<2x32xbf16>
    %c0_142 = arith.constant 0 : index
    %c0_143 = arith.constant 0 : index
    %373 = vector.load %arg16[%c0_142, %c0_143] : memref<32x3xbf16, #tpu.memory_space<vmem>>, vector<32x3xbf16>
    %cst_144 = arith.constant dense<0.000000e+00> : vector<2x3xf32>
    %374 = tpu.matmul %372, %373, %cst_144 {dimension_numbers = #tpu.dot_dimension_numbers<[1], [0], [0], [1], [0, 0, 1, 1], [], []>} : vector<2x32xbf16>, vector<32x3xbf16>, vector<2x3xf32> -> vector<2x3xf32>
    %c0_145 = arith.constant 0 : index
    %c0_146 = arith.constant 0 : index
    %375 = vector.load %arg17[%c0_145, %c0_146] : memref<1x3xf32, #tpu.memory_space<vmem>>, vector<1x3xf32>
    %376 = vector.broadcast %375 : vector<1x3xf32> to vector<2x3xf32>
    %377 = arith.addf %374, %376 : vector<2x3xf32>
    %c0_147 = arith.constant 0 : index
    %c0_148 = arith.constant 0 : index
    %378 = vector.load %arg18[%c0_147, %c0_148] : memref<2x3xf32, #tpu.memory_space<vmem>>, vector<2x3xf32>
    tpu.vector_store %arg18[%c0_147, %c0_148], %377 {strides = array<i32>} : memref<2x3xf32, #tpu.memory_space<vmem>>, vector<2x3xf32>,
    %379 = arith.negf %377 : vector<2x3xf32>
    %380 = math.exp %379 : vector<2x3xf32>
    %cst_149 = arith.constant 1.000000e+00 : f32
    %381 = vector.broadcast %cst_149 : f32 to vector<2x3xf32>
    %382 = arith.addf %381, %380 : vector<2x3xf32>
    %383 = arith.divf %381, %382 : vector<2x3xf32>
    %c0_150 = arith.constant 0 : index
    %c0_151 = arith.constant 0 : index
    %384 = vector.load %arg19[%c0_150, %c0_151] : memref<2x3xf32, #tpu.memory_space<vmem>>, vector<2x3xf32>
    tpu.vector_store %arg19[%c0_150, %c0_151], %383 {strides = array<i32>} : memref<2x3xf32, #tpu.memory_space<vmem>>, vector<2x3xf32>,
    return
  }
}

</mosaic_0001>

<llo_original>
// kernel: bertweet_base_sentiment.1
$region0: #{bertweet_base_sentiment.1}
  #allocation0 [shape = 'u32[]', space=smem, size = 0x4, offset = 0x4, fixed_abs, tag = 'smem constant byte address 0x4 - core index']
  #allocation1 [shape = 'u32[72,128]{1,0:T(1,128)}', space=vmem, size = 0x9000, scoped, tag = 'internal scratch']
  %s0 = inlined_call_operand.vmem [shape: f32[2,16], index: 0, kind: input, shape index: {}]
  %s1 = inlined_call_operand.vmem [shape: f32[16,16], index: 1, kind: input, shape index: {}]
  %s2 = inlined_call_operand.vmem [shape: f32[16,32], index: 2, kind: input, shape index: {}]
  %s3 = inlined_call_operand.vmem [shape: f32[2,32], index: 3, kind: input, shape index: {}]
  %s4 = inlined_call_operand.hbm [shape: bf16[2,32,1152], index: 4, kind: input, shape index: {}]
  %s5 = inlined_call_operand.vmem [shape: f32[2,1,1152], index: 5, kind: input, shape index: {}]
  %s6 = inlined_call_operand.vmem [shape: bf16[2,128,32], index: 6, kind: input, shape index: {}]
  %s7 = inlined_call_operand.vmem [shape: f32[2,1,32], index: 7, kind: input, shape index: {}, may-alias: {7,11}]
  %s8 = inlined_call_operand.vmem [shape: bf16[2,32,64], index: 8, kind: input, shape index: {}]
  %s9 = inlined_call_operand.vmem [shape: f32[2,1,64], index: 9, kind: input, shape index: {}]
  %s10 = inlined_call_operand.vmem [shape: bf16[2,64,32], index: 10, kind: input, shape index: {}]
  %s11 = inlined_call_operand.vmem [shape: f32[2,1,32], index: 11, kind: input, shape index: {}, may-alias: {7,11}]
  %s12 = inlined_call_operand.vmem [shape: f32[2,2,32], index: 12, kind: input, shape index: {}, may-alias: {12,13}]
  %s13 = inlined_call_operand.vmem [shape: f32[2,2,32], index: 13, kind: input, shape index: {}, may-alias: {12,13}]
  %s14 = inlined_call_operand.vmem [shape: bf16[32,32], index: 14, kind: input, shape index: {}]
  %s15 = inlined_call_operand.vmem [shape: f32[1,32], index: 15, kind: input, shape index: {}]
  %s16 = inlined_call_operand.vmem [shape: bf16[32,3], index: 16, kind: input, shape index: {}]
  %s17 = inlined_call_operand.vmem [shape: f32[1,3], index: 17, kind: input, shape index: {}]
  %s18 = inlined_call_operand.hbm [shape: f32[2,3], index: 18, kind: output, shape index: {0}]
  %s19 = inlined_call_operand.hbm [shape: f32[2,3], index: 19, kind: output, shape index: {1}]
  %20 = xla_tuple %s18, %s19
  %s21 = sld [smem:[#allocation0]]
  $region94: #{bertweet_base_sentiment.1} parent=0
    _
  %s23 = ssub.s32 1, %s21
  %s24 = scalar_select 0, %s23, %s21
  $region1: #{bertweet_base_sentiment.1} parent=0
    #allocation2 [shape = 'u8[147456]{0}', space=vmem, size = 0x24000, scoped, tag = 'input window, operand 4, single buffered']
    #allocation3 [shape = 's32[1]{0}', space=sflag, size = 0x4, scoped, tag = 'scoped memory for bertweet_base_sentiment.1']
    #allocation4 [shape = 's32[1]{0}', space=sflag, size = 0x4, scoped, tag = 'scoped memory for bertweet_base_sentiment.1']
    #allocation5 [shape = 'u8[1024]{0}', space=vmem, size = 0x400, scoped, tag = 'output window, operand 0, single buffered']
    #allocation6 [shape = 'u8[1024]{0}', space=vmem, size = 0x400, scoped, tag = 'output window, operand 1, single buffered']
    #allocation7 [shape = 's32[1]{0}', space=sflag, size = 0x4, scoped, tag = 'scoped memory for bertweet_base_sentiment.1']
    %25 = vsyncpa [#allocation3], 0
    %26 = vsyncpa [#allocation4], 0
    %27 = vsyncpa [#allocation7], 0
    // Predicated region
    $region2: #{bertweet_base_sentiment.1} parent=1 // pred_check
      _
    $region3: #{bertweet_base_sentiment.1} parent=1 // pred_check_branch
      %29 = sbr.rel (0) target = $region5
    $region4: #{bertweet_base_sentiment.1} parent=1 // pred_region
      _
    $region5: #{bertweet_base_sentiment.1} parent=1 // pred_fallthru
      _
    // Predicated region
    $region6: #{bertweet_base_sentiment.1} parent=1 // pred_check
      _
    $region7: #{bertweet_base_sentiment.1} parent=1 // pred_check_branch
      %31 = sbr.rel (0) target = $region9
    $region8: #{bertweet_base_sentiment.1} parent=1 // pred_region
      _
    $region9: #{bertweet_base_sentiment.1} parent=1 // pred_fallthru
      _
    // Predicated region
    $region10: #{bertweet_base_sentiment.1} parent=1 // pred_check
      _
    $region11: #{bertweet_base_sentiment.1} parent=1 // pred_check_branch
      %33 = sbr.rel (0) target = $region13
    $region12: #{bertweet_base_sentiment.1} parent=1 // pred_region
      _
    $region13: #{bertweet_base_sentiment.1} parent=1 // pred_fallthru
      _
    // Predicated region
    $region14: #{bertweet_base_sentiment.1} parent=1 // pred_check
      _
    $region15: #{bertweet_base_sentiment.1} parent=1 // pred_check_branch
      %35 = sbr.rel (0) target = $region17
    $region16: #{bertweet_base_sentiment.1} parent=1 // pred_region
      _
    $region17: #{bertweet_base_sentiment.1} parent=1 // pred_fallthru
      _
    // Predicated region
    $region18: #{bertweet_base_sentiment.1} parent=1 // pred_check
      _
    $region19: #{bertweet_base_sentiment.1} parent=1 // pred_check_branch
      %37 = sbr.rel (0) target = $region21
    $region20: #{bertweet_base_sentiment.1} parent=1 // pred_region
      %39 = vsyncadd [#allocation3], 0
      %s40 = sshll.u32 %s4, 4
      %s41 = int_to_ptr.hbm [resolvable:$true] %s40
      %s42 = sshll.u32 [#allocation2], 4
      %s43 = int_to_ptr.vmem [resolvable:$true] %s42
      %48 = dma.hbm_to_vmem [thread:$0]  %s41, 4608, %s43, [#allocation3], 576, 576, 36
    $region21: #{bertweet_base_sentiment.1} parent=1 // pred_fallthru
      _
    // Predicated region
    $region22: #{bertweet_base_sentiment.1} parent=1 // pred_check
      _
    $region23: #{bertweet_base_sentiment.1} parent=1 // pred_check_branch
      %50 = sbr.rel (0) target = $region25
    $region24: #{bertweet_base_sentiment.1} parent=1 // pred_region
      _
    $region25: #{bertweet_base_sentiment.1} parent=1 // pred_fallthru
      _
    // Predicated region
    $region26: #{bertweet_base_sentiment.1} parent=1 // pred_check
      _
    $region27: #{bertweet_base_sentiment.1} parent=1 // pred_check_branch
      %52 = sbr.rel (0) target = $region29
    $region28: #{bertweet_base_sentiment.1} parent=1 // pred_region
      _
    $region29: #{bertweet_base_sentiment.1} parent=1 // pred_fallthru
      _
    // Predicated region
    $region30: #{bertweet_base_sentiment.1} parent=1 // pred_check
      _
    $region31: #{bertweet_base_sentiment.1} parent=1 // pred_check_branch
      %54 = sbr.rel (0) target = $region33
    $region32: #{bertweet_base_sentiment.1} parent=1 // pred_region
      _
    $region33: #{bertweet_base_sentiment.1} parent=1 // pred_fallthru
      _
    // Predicated region
    $region34: #{bertweet_base_sentiment.1} parent=1 // pred_check
      _
    $region35: #{bertweet_base_sentiment.1} parent=1 // pred_check_branch
      %56 = sbr.rel (0) target = $region37
    $region36: #{bertweet_base_sentiment.1} parent=1 // pred_region
      _
    $region37: #{bertweet_base_sentiment.1} parent=1 // pred_fallthru
      _
    // Predicated region
    $region38: #{bertweet_base_sentiment.1} parent=1 // pred_check
      _
    $region39: #{bertweet_base_sentiment.1} parent=1 // pred_check_branch
      %58 = sbr.rel (0) target = $region41
    $region40: #{bertweet_base_sentiment.1} parent=1 // pred_region
      _
    $region41: #{bertweet_base_sentiment.1} parent=1 // pred_fallthru
      _
    // Predicated region
    $region42: #{bertweet_base_sentiment.1} parent=1 // pred_check
      _
    $region43: #{bertweet_base_sentiment.1} parent=1 // pred_check_branch
      %60 = sbr.rel (0) target = $region45
    $region44: #{bertweet_base_sentiment.1} parent=1 // pred_region
      _
    $region45: #{bertweet_base_sentiment.1} parent=1 // pred_fallthru
      _
    // Predicated region
    $region46: #{bertweet_base_sentiment.1} parent=1 // pred_check
      _
    $region47: #{bertweet_base_sentiment.1} parent=1 // pred_check_branch
      %62 = sbr.rel (0) target = $region49
    $region48: #{bertweet_base_sentiment.1} parent=1 // pred_region
      _
    $region49: #{bertweet_base_sentiment.1} parent=1 // pred_fallthru
      _
    // Predicated region
    $region50: #{bertweet_base_sentiment.1} parent=1 // pred_check
      _
    $region51: #{bertweet_base_sentiment.1} parent=1 // pred_check_branch
      %64 = sbr.rel (0) target = $region53
    $region52: #{bertweet_base_sentiment.1} parent=1 // pred_region
      _
    $region53: #{bertweet_base_sentiment.1} parent=1 // pred_fallthru
      _
    // Predicated region
    $region54: #{bertweet_base_sentiment.1} parent=1 // pred_check
      _
    $region55: #{bertweet_base_sentiment.1} parent=1 // pred_check_branch
      %66 = sbr.rel (0) target = $region57
    $region56: #{bertweet_base_sentiment.1} parent=1 // pred_region
      _
    $region57: #{bertweet_base_sentiment.1} parent=1 // pred_fallthru
      _
    // Predicated region
    $region58: #{bertweet_base_sentiment.1} parent=1 // pred_check
      _
    $region59: #{bertweet_base_sentiment.1} parent=1 // pred_check_branch
      %68 = sbr.rel (0) target = $region61
    $region60: #{bertweet_base_sentiment.1} parent=1 // pred_region
      _
    $region61: #{bertweet_base_sentiment.1} parent=1 // pred_fallthru
      _
    // Predicated region
    $region62: #{bertweet_base_sentiment.1} parent=1 // pred_check
      _
    $region63: #{bertweet_base_sentiment.1} parent=1 // pred_check_branch
      %70 = sbr.rel (0) target = $region65
    $region64: #{bertweet_base_sentiment.1} parent=1 // pred_region
      _
    $region65: #{bertweet_base_sentiment.1} parent=1 // pred_fallthru
      _
    // Predicated region
    $region66: #{bertweet_base_sentiment.1} parent=1 // pred_check
      _
    $region67: #{bertweet_base_sentiment.1} parent=1 // pred_check_branch
      %72 = sbr.rel (0) target = $region69
    $region68: #{bertweet_base_sentiment.1} parent=1 // pred_region
      _
    $region69: #{bertweet_base_sentiment.1} parent=1 // pred_fallthru
      _
    // Predicated region
    $region70: #{bertweet_base_sentiment.1} parent=1 // pred_check
      _
    $region71: #{bertweet_base_sentiment.1} parent=1 // pred_check_branch
      %74 = sbr.rel (0) target = $region73
    $region72: #{bertweet_base_sentiment.1} parent=1 // pred_region
      _
    $region73: #{bertweet_base_sentiment.1} parent=1 // pred_fallthru
      _
    // Predicated region
    $region74: #{bertweet_base_sentiment.1} parent=1 // pred_check
      _
    $region75: #{bertweet_base_sentiment.1} parent=1 // pred_check_branch
      %76 = sbr.rel (0) target = $region77
    $region76: #{bertweet_base_sentiment.1} parent=1 // pred_region
      %78 = dma.done [#allocation3], 4608
    $region77: #{bertweet_base_sentiment.1} parent=1 // pred_fallthru
      _
    %v80 = vld [vmem:[%s3] sm:$0x3]
    %v81 = vld [vmem:[%s2] sm:$0xff]
    %v82 = vld [vmem:[%s2 + $0x8] sm:$0xff]
    %vm83 = vcmask 261120
    %v84 = vsel %vm83, %v81, 0.0
    %85 = vadd.xlane.f32.xlu0 %v84
    %v86 = vpop.xlane.xlu0 %85
    %v87 = vsel %vm83, %v82, 0.0
    %88 = vadd.xlane.f32.xlu0 %v87
    %v89 = vpop.xlane.xlu0 %88
    %v90 = vrcp.pop 32.0
    %v91 = vmul.f32 32.0, %v90
    %v92 = vsub.f32 1.0, %v91
    %v93 = vmul.f32 %v90, %v92
    %v94 = vadd.f32 %v90, %v93
    %vm95 = vweird.f32 %v90
    %v96 = vsel %vm95, %v90, %v94
    %v97 = vmul.f32 %v86, %v96
    %v98 = vmul.f32 %v89, %v96
    %v99 = vsub.f32 %v81, %v97
    %v100 = vsub.f32 %v82, %v98
    %v101 = vmul.f32 %v99, %v99
    %v102 = vmul.f32 %v100, %v100
    %v103 = vsel %vm83, %v101, 0.0
    %104 = vadd.xlane.f32.xlu0 %v103
    %v105 = vpop.xlane.xlu0 %104
    %v106 = vsel %vm83, %v102, 0.0
    %107 = vadd.xlane.f32.xlu0 %v106
    %v108 = vpop.xlane.xlu0 %107
    %v109 = vmul.f32 %v105, %v96
    %v110 = vmul.f32 %v108, %v96
    %v111 = vadd.f32 %v109, 1e-05
    %v112 = vadd.f32 %v110, 1e-05
    %v113 = vrsqrt.pop %v111
    %v114 = vmul.f32 %v113, %v111
    %v115 = vmul.f32 %v114, %v113
    %v116 = vmul.f32 0.5, %v115
    %v117 = vsub.f32 1.5, %v116
    %v118 = vmul.f32 %v113, %v117
    %vm119 = vweird.f32 %v111
    %vm120 = vweird.f32 %v113
    %vm121 = vmor %vm119, %vm120
    %v122 = vsel %vm121, %v113, %v118
    %v123 = vrsqrt.pop %v112
    %v124 = vmul.f32 %v123, %v112
    %v125 = vmul.f32 %v124, %v123
    %v126 = vmul.f32 0.5, %v125
    %v127 = vsub.f32 1.5, %v126
    %v128 = vmul.f32 %v123, %v127
    %vm129 = vweird.f32 %v112
    %vm130 = vweird.f32 %v123
    %vm131 = vmor %vm129, %vm130
    %v132 = vsel %vm131, %v123, %v128
    %v133 = vmul.f32 %v99, %v122
    %v134 = vmul.f32 %v100, %v132
    %v135 = vperm.slane %v80, 0
    %v136 = vmul.f32 %v133, %v135
    %v137 = vmul.f32 %v134, %v135
    %v138 = vperm.slane %v80, 1
    %v139 = vadd.f32 %v136, %v138
    %v140 = vadd.f32 %v137, %v138
    %v141 = vld [vmem:[%s1] sm:$0xff]
    %v142 = vld [vmem:[%s1 + $0x8] sm:$0xff]
    %v143 = vpack.c.bf16 %v140, %v139
    %v144 = vld [vmem:[#allocation2] sm:$0xff]
    %v145 = vld [vmem:[#allocation2 + $0x8] sm:$0xff]
    %v146 = vld [vmem:[#allocation2 + $0x10] sm:$0xff]
    %v147 = vld [vmem:[#allocation2 + $0x18] sm:$0xff]
    %v148 = vld [vmem:[#allocation2 + $0x20] sm:$0xf]
    %v149 = vld [vmem:[#allocation2 + $0x24] sm:$0xff]
    %v150 = vld [vmem:[#allocation2 + $0x2c] sm:$0xff]
    %v151 = vld [vmem:[#allocation2 + $0x34] sm:$0xff]
    %v152 = vld [vmem:[#allocation2 + $0x3c] sm:$0xff]
    %v153 = vld [vmem:[#allocation2 + $0x44] sm:$0xf]
    %v154 = vld [vmem:[#allocation2 + $0x48] sm:$0xff]
    %v155 = vld [vmem:[#allocation2 + $0x50] sm:$0xff]
    %v156 = vld [vmem:[#allocation2 + $0x58] sm:$0xff]
    %v157 = vld [vmem:[#allocation2 + $0x60] sm:$0xff]
    %v158 = vld [vmem:[#allocation2 + $0x68] sm:$0xf]
    %v159 = vld [vmem:[#allocation2 + $0x6c] sm:$0xff]
    %v160 = vld [vmem:[#allocation2 + $0x74] sm:$0xff]
    %v161 = vld [vmem:[#allocation2 + $0x7c] sm:$0xff]
    %v162 = vld [vmem:[#allocation2 + $0x84] sm:$0xff]
    %v163 = vld [vmem:[#allocation2 + $0x8c] sm:$0xf]
    %v164 = vld [vmem:[%s5] sm:$0xff]
    %v165 = vld [vmem:[%s5 + $0x8] sm:$0x1]
    %v168 = vperm.slane %v164, 0
    %v169 = vperm.slane %v164, 1
    %v170 = vperm.slane %v164, 2
    %v171 = vperm.slane %v164, 3
    %v172 = vperm.slane %v164, 4
    %v173 = vperm.slane %v164, 5
    %v174 = vperm.slane %v164, 6
    %v175 = vperm.slane %v164, 7
    %v176 = vperm.slane %v165, 0
    %v206 = vunpack.c.l.b16 %v144
    %v207 = vunpack.c.h.b16 %v144
    %v208 = vunpack.c.l.b16 %v145
    %v209 = vunpack.c.h.b16 %v145
    %v210 = vunpack.c.l.b16 %v146
    %v211 = vunpack.c.h.b16 %v146
    %v212 = vunpack.c.l.b16 %v147
    %v213 = vunpack.c.h.b16 %v147
    %v214 = vunpack.c.l.b16 %v148
    %v215 = vunpack.c.l.b16 %v149
    %v216 = vunpack.c.h.b16 %v149
    %v217 = vunpack.c.l.b16 %v150
    %v218 = vunpack.c.h.b16 %v150
    %v219 = vunpack.c.l.b16 %v151
    %v220 = vunpack.c.h.b16 %v151
    %v221 = vunpack.c.l.b16 %v152
    %v222 = vunpack.c.h.b16 %v152
    %v223 = vunpack.c.l.b16 %v153
    %v224 = vunpack.c.l.b16 %v154
    %v225 = vunpack.c.h.b16 %v154
    %v226 = vunpack.c.l.b16 %v155
    %v227 = vunpack.c.h.b16 %v155
    %v228 = vunpack.c.l.b16 %v156
    %v229 = vunpack.c.h.b16 %v156
    %v230 = vunpack.c.l.b16 %v157
    %v231 = vunpack.c.h.b16 %v157
    %v232 = vunpack.c.l.b16 %v158
    %v233 = vunpack.c.l.b16 %v159
    %v234 = vunpack.c.h.b16 %v159
    %v235 = vunpack.c.l.b16 %v160
    %v236 = vunpack.c.h.b16 %v160
    %v237 = vunpack.c.l.b16 %v161
    %v238 = vunpack.c.h.b16 %v161
    %v239 = vunpack.c.l.b16 %v162
    %v240 = vunpack.c.h.b16 %v162
    %v241 = vunpack.c.l.b16 %v163
    %v242 = vpack.c.b16 %v215, %v206
    %v243 = vpack.c.b16 %v216, %v207
    %v244 = vpack.c.b16 %v217, %v208
    %v245 = vpack.c.b16 %v218, %v209
    %v246 = vpack.c.b16 %v219, %v210
    %v247 = vpack.c.b16 %v220, %v211
    %v248 = vpack.c.b16 %v221, %v212
    %v249 = vpack.c.b16 %v222, %v213
    %v250 = vpack.c.b16 %v223, %v214
    %v251 = vpack.c.b16 %v233, %v224
    %v252 = vpack.c.b16 %v234, %v225
    %v253 = vpack.c.b16 %v235, %v226
    %v254 = vpack.c.b16 %v236, %v227
    %v255 = vpack.c.b16 %v237, %v228
    %v256 = vpack.c.b16 %v238, %v229
    %v257 = vpack.c.b16 %v239, %v230
    %v258 = vpack.c.b16 %v240, %v231
    %v259 = vpack.c.b16 %v241, %v232
    %v279 = vsel %vm83, %v143, 0
    %281 = vmatpush.bf16.msra.mxu0 0
    %282 = vmatpush.bf16.msra.mxu0 0
    %283 = vmatpush.bf16.msra.mxu0 0
    %284 = vmatpush.bf16.msra.mxu0 0
    %285 = vmatpush.bf16.msra.mxu0 0
    %286 = vmatpush.bf16.msra.mxu0 0
    %287 = vmatpush.bf16.msra.mxu0 %v251
    %288 = vmatpush.bf16.msra.mxu0 %v242
    %289 = vmatmul.bf16.gmra.mxu0 %v279
    %v290 = vpop.f32.mrf.mxu0
    %v291 = vadd.f32 %v168, %v290
    %v292 = vpop.f32.mrf.mxu0
    %v293 = vadd.f32 %v168, %v292
    %294 = vdwg.mxu0
    %295 = vmatpush.bf16.msra.mxu0 0
    %296 = vmatpush.bf16.msra.mxu0 0
    %297 = vmatpush.bf16.msra.mxu0 0
    %298 = vmatpush.bf16.msra.mxu0 0
    %299 = vmatpush.bf16.msra.mxu0 0
    %300 = vmatpush.bf16.msra.mxu0 0
    %301 = vmatpush.bf16.msra.mxu0 %v252
    %302 = vmatpush.bf16.msra.mxu0 %v243
    %303 = vmatmul.bf16.gmra.mxu0 %v279
    %v304 = vpop.f32.mrf.mxu0
    %v305 = vadd.f32 %v169, %v304
    %v306 = vpop.f32.mrf.mxu0
    %v307 = vadd.f32 %v169, %v306
    %308 = vdwg.mxu0
    %309 = vmatpush.bf16.msra.mxu0 0
    %310 = vmatpush.bf16.msra.mxu0 0
    %311 = vmatpush.bf16.msra.mxu0 0
    %312 = vmatpush.bf16.msra.mxu0 0
    %313 = vmatpush.bf16.msra.mxu0 0
    %314 = vmatpush.bf16.msra.mxu0 0
    %315 = vmatpush.bf16.msra.mxu0 %v253
    %316 = vmatpush.bf16.msra.mxu0 %v244
    %317 = vmatmul.bf16.gmra.mxu0 %v279
    %v318 = vpop.f32.mrf.mxu0
    %v319 = vadd.f32 %v170, %v318
    %v320 = vpop.f32.mrf.mxu0
    %v321 = vadd.f32 %v170, %v320
    %322 = vdwg.mxu0
    %323 = vmatpush.bf16.msra.mxu0 0
    %324 = vmatpush.bf16.msra.mxu0 0
    %325 = vmatpush.bf16.msra.mxu0 0
    %326 = vmatpush.bf16.msra.mxu0 0
    %327 = vmatpush.bf16.msra.mxu0 0
    %328 = vmatpush.bf16.msra.mxu0 0
    %329 = vmatpush.bf16.msra.mxu0 %v254
    %330 = vmatpush.bf16.msra.mxu0 %v245
    %331 = vmatmul.bf16.gmra.mxu0 %v279
    %v332 = vpop.f32.mrf.mxu0
    %v333 = vadd.f32 %v171, %v332
    %v334 = vpop.f32.mrf.mxu0
    %v335 = vadd.f32 %v171, %v334
    %336 = vdwg.mxu0
    %337 = vmatpush.bf16.msra.mxu0 0
    %338 = vmatpush.bf16.msra.mxu0 0
    %339 = vmatpush.bf16.msra.mxu0 0
    %340 = vmatpush.bf16.msra.mxu0 0
    %341 = vmatpush.bf16.msra.mxu0 0
    %342 = vmatpush.bf16.msra.mxu0 0
    %343 = vmatpush.bf16.msra.mxu0 %v255
    %344 = vmatpush.bf16.msra.mxu0 %v246
    %345 = vmatmul.bf16.gmra.mxu0 %v279
    %v346 = vpop.f32.mrf.mxu0
    %v347 = vadd.f32 %v172, %v346
    %v348 = vpop.f32.mrf.mxu0
    %v349 = vadd.f32 %v172, %v348
    %350 = vdwg.mxu0
    %351 = vmatpush.bf16.msra.mxu0 0
    %352 = vmatpush.bf16.msra.mxu0 0
    %353 = vmatpush.bf16.msra.mxu0 0
    %354 = vmatpush.bf16.msra.mxu0 0
    %355 = vmatpush.bf16.msra.mxu0 0
    %356 = vmatpush.bf16.msra.mxu0 0
    %357 = vmatpush.bf16.msra.mxu0 %v256
    %358 = vmatpush.bf16.msra.mxu0 %v247
    %359 = vmatmul.bf16.gmra.mxu0 %v279
    %v360 = vpop.f32.mrf.mxu0
    %v361 = vadd.f32 %v173, %v360
    %v362 = vpop.f32.mrf.mxu0
    %v363 = vadd.f32 %v173, %v362
    %364 = vdwg.mxu0
    %365 = vmatpush.bf16.msra.mxu0 0
    %366 = vmatpush.bf16.msra.mxu0 0
    %367 = vmatpush.bf16.msra.mxu0 0
    %368 = vmatpush.bf16.msra.mxu0 0
    %369 = vmatpush.bf16.msra.mxu0 0
    %370 = vmatpush.bf16.msra.mxu0 0
    %371 = vmatpush.bf16.msra.mxu0 %v257
    %372 = vmatpush.bf16.msra.mxu0 %v248
    %373 = vmatmul.bf16.gmra.mxu0 %v279
    %v374 = vpop.f32.mrf.mxu0
    %v375 = vadd.f32 %v174, %v374
    %v376 = vpop.f32.mrf.mxu0
    %v377 = vadd.f32 %v174, %v376
    %378 = vdwg.mxu0
    %379 = vmatpush.bf16.msra.mxu0 0
    %380 = vmatpush.bf16.msra.mxu0 0
    %381 = vmatpush.bf16.msra.mxu0 0
    %382 = vmatpush.bf16.msra.mxu0 0
    %383 = vmatpush.bf16.msra.mxu0 0
    %384 = vmatpush.bf16.msra.mxu0 0
    %385 = vmatpush.bf16.msra.mxu0 %v258
    %386 = vmatpush.bf16.msra.mxu0 %v249
    %387 = vmatmul.bf16.gmra.mxu0 %v279
    %v388 = vpop.f32.mrf.mxu0
    %v389 = vadd.f32 %v175, %v388
    %v390 = vpop.f32.mrf.mxu0
    %v391 = vadd.f32 %v175, %v390
    %392 = vdwg.mxu0
    %393 = vmatpush.bf16.msra.mxu0 0
    %394 = vmatpush.bf16.msra.mxu0 0
    %395 = vmatpush.bf16.msra.mxu0 0
    %396 = vmatpush.bf16.msra.mxu0 0
    %397 = vmatpush.bf16.msra.mxu0 0
    %398 = vmatpush.bf16.msra.mxu0 0
    %399 = vmatpush.bf16.msra.mxu0 %v259
    %400 = vmatpush.bf16.msra.mxu0 %v250
    %401 = vmatmul.bf16.gmra.mxu0 %v279
    %v402 = vpop.f32.mrf.mxu0
    %v403 = vadd.f32 %v176, %v402
    %v404 = vpop.f32.mrf.mxu0
    %v405 = vadd.f32 %v176, %v404
    %406 = vdwg.mxu0
    %v407 = vpack.c.bf16 %v305, %v291
    %v408 = vpack.c.bf16 %v333, %v319
    %v409 = vpack.c.bf16 %v361, %v347
    %v410 = vpack.c.bf16 %v389, %v375
    %v411 = vpack.c.bf16 %v403, %v403
    %v412 = vpack.c.bf16 %v307, %v293
    %v413 = vpack.c.bf16 %v335, %v321
    %v414 = vpack.c.bf16 %v363, %v349
    %v415 = vpack.c.bf16 %v391, %v377
    %v416 = vpack.c.bf16 %v405, %v405
    %v419 = vunpack.c.l.b16 %v407
    %v420 = vunpack.c.l.b16 %v412
    %v421 = vpack.c.b16 %v420, %v419
    %v425 = vunpack.c.l.b16 %v409
    %v426 = vunpack.c.l.b16 %v414
    %v427 = vpack.c.b16 %v426, %v425
    %429 = vmatpush.bf16.xpose.msra.mxu0 0
    %430 = vmatpush.bf16.xpose.msra.mxu0 0
    %431 = vmatpush.bf16.xpose.msra.mxu0 0
    %432 = vmatpush.bf16.xpose.msra.mxu0 0
    %433 = vmatpush.bf16.xpose.msra.mxu0 0
    %434 = vmatpush.bf16.xpose.msra.mxu0 0
    %435 = vmatpush.bf16.xpose.msra.mxu0 0
    %436 = vmatpush.bf16.xpose.msra.mxu0 %v427
    %437 = vmatmul.bf16.gmra.mxu0 %v421
    %v438 = vpop.f32.mrf.mxu0
    %v439 = vadd.f32 %v141, %v438
    %v440 = vpop.f32.mrf.mxu0
    %v441 = vadd.f32 %v142, %v440
    %442 = vdwg.mxu0
    %vm443 = vcmask 130048
    %v444 = vsel %vm443, %v439, -inf
    %445 = vmax.xlane.f32.xlu0 %v444
    %v446 = vpop.xlane.xlu0 %445
    %v447 = vsel %vm443, %v441, -inf
    %448 = vmax.xlane.f32.xlu0 %v447
    %v449 = vpop.xlane.xlu0 %448
    %v450 = vsub.f32 %v439, %v446
    %v451 = vsub.f32 %v441, %v449
    %v452 = vmul.f32 %v450, 1.442695
    %v453 = vpow.pop %v452
    %v454 = vmul.f32 %v451, 1.442695
    %v455 = vpow.pop %v454
    %v456 = vsel %vm443, %v453, 0.0
    %457 = vadd.xlane.f32.xlu0 %v456
    %v458 = vpop.xlane.xlu0 %457
    %v459 = vsel %vm443, %v455, 0.0
    %460 = vadd.xlane.f32.xlu0 %v459
    %v461 = vpop.xlane.xlu0 %460
    %v462 = vrcp.pop %v458
    %v463 = vrcp.pop %v461
    %v464 = vmul.f32 %v453, %v462
    %v465 = vmul.f32 %v455, %v463
    %v466 = vpack.c.bf16 %v465, %v464
    %v467 = vunpack.c.h.b16 %v407
    %v468 = vunpack.c.h.b16 %v412
    %v469 = vpack.c.b16 %v468, %v467
    %471 = vmatpush.bf16.xpose.msra.mxu0 0
    %472 = vmatpush.bf16.xpose.msra.mxu0 0
    %473 = vmatpush.bf16.xpose.msra.mxu0 0
    %474 = vmatpush.bf16.xpose.msra.mxu0 0
    %475 = vmatpush.bf16.xpose.msra.mxu0 0
    %476 = vmatpush.bf16.xpose.msra.mxu0 0
    %477 = vmatpush.bf16.xpose.msra.mxu0 0
    %478 = vmatpush.bf16.xpose.msra.mxu0 %v427
    %479 = vmatmul.bf16.gmra.mxu0 %v469
    %v480 = vpop.f32.mrf.mxu0
    %v481 = vadd.f32 %v141, %v480
    %v482 = vpop.f32.mrf.mxu0
    %v483 = vadd.f32 %v142, %v482
    %484 = vdwg.mxu0
    %v485 = vsel %vm443, %v481, -inf
    %486 = vmax.xlane.f32.xlu0 %v485
    %v487 = vpop.xlane.xlu0 %486
    %v488 = vsel %vm443, %v483, -inf
    %489 = vmax.xlane.f32.xlu0 %v488
    %v490 = vpop.xlane.xlu0 %489
    %v491 = vsub.f32 %v481, %v487
    %v492 = vsub.f32 %v483, %v490
    %v493 = vmul.f32 %v491, 1.442695
    %v494 = vpow.pop %v493
    %v495 = vmul.f32 %v492, 1.442695
    %v496 = vpow.pop %v495
    %v497 = vsel %vm443, %v494, 0.0
    %498 = vadd.xlane.f32.xlu0 %v497
    %v499 = vpop.xlane.xlu0 %498
    %v500 = vsel %vm443, %v496, 0.0
    %501 = vadd.xlane.f32.xlu0 %v500
    %v502 = vpop.xlane.xlu0 %501
    %v503 = vrcp.pop %v499
    %v504 = vrcp.pop %v502
    %v505 = vmul.f32 %v494, %v503
    %v506 = vmul.f32 %v496, %v504
    %v507 = vpack.c.bf16 %v506, %v505
    %v510 = vunpack.c.l.b16 %v410
    %v511 = vunpack.c.l.b16 %v415
    %v512 = vpack.c.b16 %v511, %v510
    %v515 = vsel %vm443, %v507, 0
    %517 = vmatpush.bf16.msra.mxu0 0
    %518 = vmatpush.bf16.msra.mxu0 0
    %519 = vmatpush.bf16.msra.mxu0 0
    %520 = vmatpush.bf16.msra.mxu0 0
    %521 = vmatpush.bf16.msra.mxu0 0
    %522 = vmatpush.bf16.msra.mxu0 0
    %523 = vmatpush.bf16.msra.mxu0 0
    %524 = vmatpush.bf16.msra.mxu0 %v512
    %525 = vmatmul.bf16.gmra.mxu0 %v515
    %v526 = vpop.f32.mrf.mxu0
    %v527 = vadd.f32 0.0, %v526
    %v528 = vpop.f32.mrf.mxu0
    %v529 = vadd.f32 0.0, %v528
    %530 = vdwg.mxu0
    %v531 = vunpack.c.h.b16 %v409
    %v532 = vunpack.c.h.b16 %v414
    %v533 = vpack.c.b16 %v532, %v531
    %v536 = vsel %vm443, %v466, 0
    %538 = vmatpush.bf16.msra.mxu0 0
    %539 = vmatpush.bf16.msra.mxu0 0
    %540 = vmatpush.bf16.msra.mxu0 0
    %541 = vmatpush.bf16.msra.mxu0 0
    %542 = vmatpush.bf16.msra.mxu0 0
    %543 = vmatpush.bf16.msra.mxu0 0
    %544 = vmatpush.bf16.msra.mxu0 0
    %545 = vmatpush.bf16.msra.mxu0 %v533
    %546 = vmatmul.bf16.gmra.mxu0 %v536
    %v547 = vpop.f32.mrf.mxu0
    %v548 = vadd.f32 %v527, %v547
    %v549 = vpop.f32.mrf.mxu0
    %v550 = vadd.f32 %v529, %v549
    %551 = vdwg.mxu0
    %v554 = vunpack.c.l.b16 %v408
    %v555 = vunpack.c.l.b16 %v413
    %v556 = vpack.c.b16 %v555, %v554
    %558 = vmatpush.bf16.xpose.msra.mxu0 0
    %559 = vmatpush.bf16.xpose.msra.mxu0 0
    %560 = vmatpush.bf16.xpose.msra.mxu0 0
    %561 = vmatpush.bf16.xpose.msra.mxu0 0
    %562 = vmatpush.bf16.xpose.msra.mxu0 0
    %563 = vmatpush.bf16.xpose.msra.mxu0 0
    %564 = vmatpush.bf16.xpose.msra.mxu0 0
    %565 = vmatpush.bf16.xpose.msra.mxu0 %v427
    %566 = vmatmul.bf16.gmra.mxu0 %v556
    %v567 = vpop.f32.mrf.mxu0
    %v568 = vadd.f32 %v141, %v567
    %v569 = vpop.f32.mrf.mxu0
    %v570 = vadd.f32 %v142, %v569
    %571 = vdwg.mxu0
    %v572 = vsel %vm443, %v568, -inf
    %573 = vmax.xlane.f32.xlu0 %v572
    %v574 = vpop.xlane.xlu0 %573
    %v575 = vsel %vm443, %v570, -inf
    %576 = vmax.xlane.f32.xlu0 %v575
    %v577 = vpop.xlane.xlu0 %576
    %v578 = vsub.f32 %v568, %v574
    %v579 = vsub.f32 %v570, %v577
    %v580 = vmul.f32 %v578, 1.442695
    %v581 = vpow.pop %v580
    %v582 = vmul.f32 %v579, 1.442695
    %v583 = vpow.pop %v582
    %v584 = vsel %vm443, %v581, 0.0
    %585 = vadd.xlane.f32.xlu0 %v584
    %v586 = vpop.xlane.xlu0 %585
    %v587 = vsel %vm443, %v583, 0.0
    %588 = vadd.xlane.f32.xlu0 %v587
    %v589 = vpop.xlane.xlu0 %588
    %v590 = vrcp.pop %v586
    %v591 = vrcp.pop %v589
    %v592 = vmul.f32 %v581, %v590
    %v593 = vmul.f32 %v583, %v591
    %v594 = vpack.c.bf16 %v593, %v592
    %v595 = vunpack.c.h.b16 %v410
    %v596 = vunpack.c.h.b16 %v415
    %v597 = vpack.c.b16 %v596, %v595
    %v600 = vsel %vm443, %v594, 0
    %602 = vmatpush.bf16.msra.mxu0 0
    %603 = vmatpush.bf16.msra.mxu0 0
    %604 = vmatpush.bf16.msra.mxu0 0
    %605 = vmatpush.bf16.msra.mxu0 0
    %606 = vmatpush.bf16.msra.mxu0 0
    %607 = vmatpush.bf16.msra.mxu0 0
    %608 = vmatpush.bf16.msra.mxu0 0
    %609 = vmatpush.bf16.msra.mxu0 %v597
    %610 = vmatmul.bf16.gmra.mxu0 %v600
    %v611 = vpop.f32.mrf.mxu0
    %v612 = vadd.f32 0.0, %v611
    %v613 = vpop.f32.mrf.mxu0
    %v614 = vadd.f32 0.0, %v613
    %615 = vdwg.mxu0
    %v616 = vadd.f32 %v548, %v612
    %v617 = vadd.f32 %v550, %v614
    %v618 = vunpack.c.h.b16 %v408
    %v619 = vunpack.c.h.b16 %v413
    %v620 = vpack.c.b16 %v619, %v618
    %622 = vmatpush.bf16.xpose.msra.mxu0 0
    %623 = vmatpush.bf16.xpose.msra.mxu0 0
    %624 = vmatpush.bf16.xpose.msra.mxu0 0
    %625 = vmatpush.bf16.xpose.msra.mxu0 0
    %626 = vmatpush.bf16.xpose.msra.mxu0 0
    %627 = vmatpush.bf16.xpose.msra.mxu0 0
    %628 = vmatpush.bf16.xpose.msra.mxu0 0
    %629 = vmatpush.bf16.xpose.msra.mxu0 %v427
    %630 = vmatmul.bf16.gmra.mxu0 %v620
    %v631 = vpop.f32.mrf.mxu0
    %v632 = vadd.f32 %v141, %v631
    %v633 = vpop.f32.mrf.mxu0
    %v634 = vadd.f32 %v142, %v633
    %635 = vdwg.mxu0
    %v636 = vsel %vm443, %v632, -inf
    %637 = vmax.xlane.f32.xlu0 %v636
    %v638 = vpop.xlane.xlu0 %637
    %v639 = vsel %vm443, %v634, -inf
    %640 = vmax.xlane.f32.xlu0 %v639
    %v641 = vpop.xlane.xlu0 %640
    %v642 = vsub.f32 %v632, %v638
    %v643 = vsub.f32 %v634, %v641
    %v644 = vmul.f32 %v642, 1.442695
    %v645 = vpow.pop %v644
    %v646 = vmul.f32 %v643, 1.442695
    %v647 = vpow.pop %v646
    %v648 = vsel %vm443, %v645, 0.0
    %649 = vadd.xlane.f32.xlu0 %v648
    %v650 = vpop.xlane.xlu0 %649
    %v651 = vsel %vm443, %v647, 0.0
    %652 = vadd.xlane.f32.xlu0 %v651
    %v653 = vpop.xlane.xlu0 %652
    %v654 = vrcp.pop %v650
    %v655 = vrcp.pop %v653
    %v656 = vmul.f32 %v645, %v654
    %v657 = vmul.f32 %v647, %v655
    %v658 = vpack.c.bf16 %v657, %v656
    %v661 = vunpack.c.l.b16 %v411
    %v662 = vunpack.c.l.b16 %v416
    %v663 = vpack.c.b16 %v662, %v661
    %v666 = vsel %vm443, %v658, 0
    %668 = vmatpush.bf16.msra.mxu0 0
    %669 = vmatpush.bf16.msra.mxu0 0
    %670 = vmatpush.bf16.msra.mxu0 0
    %671 = vmatpush.bf16.msra.mxu0 0
    %672 = vmatpush.bf16.msra.mxu0 0
    %673 = vmatpush.bf16.msra.mxu0 0
    %674 = vmatpush.bf16.msra.mxu0 0
    %675 = vmatpush.bf16.msra.mxu0 %v663
    %676 = vmatmul.bf16.gmra.mxu0 %v666
    %v677 = vpop.f32.mrf.mxu0
    %v678 = vadd.f32 0.0, %v677
    %v679 = vpop.f32.mrf.mxu0
    %v680 = vadd.f32 0.0, %v679
    %681 = vdwg.mxu0
    %v682 = vadd.f32 %v616, %v678
    %v683 = vadd.f32 %v617, %v680
    %v684 = vpack.c.bf16 %v683, %v682
    %v685 = vld [vmem:[%s6] sm:$0xf]
    %v686 = vld [vmem:[%s6 + $0x4] sm:$0xf]
    %v687 = vld [vmem:[%s6 + $0x8] sm:$0xf]
    %v688 = vld [vmem:[%s6 + $0xc] sm:$0xf]
    %v689 = vld [vmem:[%s6 + $0x10] sm:$0xf]
    %v690 = vld [vmem:[%s6 + $0x14] sm:$0xf]
    %v691 = vld [vmem:[%s6 + $0x18] sm:$0xf]
    %v692 = vld [vmem:[%s6 + $0x1c] sm:$0xf]
    %v693 = vld [vmem:[%s6 + $0x20] sm:$0xf]
    %v694 = vld [vmem:[%s6 + $0x24] sm:$0xf]
    %v695 = vld [vmem:[%s6 + $0x28] sm:$0xf]
    %v696 = vld [vmem:[%s6 + $0x2c] sm:$0xf]
    %v697 = vld [vmem:[%s6 + $0x30] sm:$0xf]
    %v698 = vld [vmem:[%s6 + $0x34] sm:$0xf]
    %v699 = vld [vmem:[%s6 + $0x38] sm:$0xf]
    %v700 = vld [vmem:[%s6 + $0x3c] sm:$0xf]
    %v701 = vld [vmem:[%s7] sm:$0x1]
    %v703 = vperm.slane %v701, 0
    %v721 = vunpack.c.l.b16 %v685
    %v722 = vunpack.c.l.b16 %v686
    %v723 = vunpack.c.l.b16 %v687
    %v724 = vunpack.c.l.b16 %v688
    %v725 = vunpack.c.l.b16 %v689
    %v726 = vunpack.c.l.b16 %v690
    %v727 = vunpack.c.l.b16 %v691
    %v728 = vunpack.c.l.b16 %v692
    %v729 = vunpack.c.l.b16 %v693
    %v730 = vunpack.c.l.b16 %v694
    %v731 = vunpack.c.l.b16 %v695
    %v732 = vunpack.c.l.b16 %v696
    %v733 = vunpack.c.l.b16 %v697
    %v734 = vunpack.c.l.b16 %v698
    %v735 = vunpack.c.l.b16 %v699
    %v736 = vunpack.c.l.b16 %v700
    %v737 = vpack.c.b16 %v722, %v721
    %v738 = vpack.c.b16 %v724, %v723
    %v739 = vpack.c.b16 %v726, %v725
    %v740 = vpack.c.b16 %v728, %v727
    %v741 = vpack.c.b16 %v730, %v729
    %v742 = vpack.c.b16 %v732, %v731
    %v743 = vpack.c.b16 %v734, %v733
    %v744 = vpack.c.b16 %v736, %v735
    %753 = vmatpush.bf16.msra.mxu0 %v744
    %754 = vmatpush.bf16.msra.mxu0 %v743
    %755 = vmatpush.bf16.msra.mxu0 %v742
    %756 = vmatpush.bf16.msra.mxu0 %v741
    %757 = vmatpush.bf16.msra.mxu0 %v740
    %758 = vmatpush.bf16.msra.mxu0 %v739
    %759 = vmatpush.bf16.msra.mxu0 %v738
    %760 = vmatpush.bf16.msra.mxu0 %v737
    %761 = vmatmul.bf16.gmra.mxu0 %v684
    %v762 = vpop.f32.mrf.mxu0
    %v763 = vadd.f32 %v703, %v762
    %v764 = vpop.f32.mrf.mxu0
    %v765 = vadd.f32 %v703, %v764
    %766 = vdwg.mxu0
    %v767 = vld [vmem:[%s12] sm:$0x3]
    %v768 = vadd.f32 %v763, %v139
    %v769 = vadd.f32 %v765, %v140
    %v770 = vsel %vm83, %v768, 0.0
    %771 = vadd.xlane.f32.xlu0 %v770
    %v772 = vpop.xlane.xlu0 %771
    %v773 = vsel %vm83, %v769, 0.0
    %774 = vadd.xlane.f32.xlu0 %v773
    %v775 = vpop.xlane.xlu0 %774
    %v776 = vmul.f32 %v772, %v96
    %v777 = vmul.f32 %v775, %v96
    %v778 = vsub.f32 %v768, %v776
    %v779 = vsub.f32 %v769, %v777
    %v780 = vmul.f32 %v778, %v778
    %v781 = vmul.f32 %v779, %v779
    %v782 = vsel %vm83, %v780, 0.0
    %783 = vadd.xlane.f32.xlu0 %v782
    %v784 = vpop.xlane.xlu0 %783
    %v785 = vsel %vm83, %v781, 0.0
    %786 = vadd.xlane.f32.xlu0 %v785
    %v787 = vpop.xlane.xlu0 %786
    %v788 = vmul.f32 %v784, %v96
    %v789 = vmul.f32 %v787, %v96
    %v790 = vadd.f32 %v788, 1e-05
    %v791 = vadd.f32 %v789, 1e-05
    %v792 = vrsqrt.pop %v790
    %v793 = vmul.f32 %v792, %v790
    %v794 = vmul.f32 %v793, %v792
    %v795 = vmul.f32 0.5, %v794
    %v796 = vsub.f32 1.5, %v795
    %v797 = vmul.f32 %v792, %v796
    %vm798 = vweird.f32 %v790
    %vm799 = vweird.f32 %v792
    %vm800 = vmor %vm798, %vm799
    %v801 = vsel %vm800, %v792, %v797
    %v802 = vrsqrt.pop %v791
    %v803 = vmul.f32 %v802, %v791
    %v804 = vmul.f32 %v803, %v802
    %v805 = vmul.f32 0.5, %v804
    %v806 = vsub.f32 1.5, %v805
    %v807 = vmul.f32 %v802, %v806
    %vm808 = vweird.f32 %v791
    %vm809 = vweird.f32 %v802
    %vm810 = vmor %vm808, %vm809
    %v811 = vsel %vm810, %v802, %v807
    %v812 = vmul.f32 %v778, %v801
    %v813 = vmul.f32 %v779, %v811
    %v814 = vperm.slane %v767, 0
    %v815 = vmul.f32 %v812, %v814
    %v816 = vmul.f32 %v813, %v814
    %v817 = vperm.slane %v767, 1
    %v818 = vadd.f32 %v815, %v817
    %v819 = vadd.f32 %v816, %v817
    %v820 = vpack.c.bf16 %v819, %v818
    %v821 = vld [vmem:[%s8] sm:$0xf]
    %v822 = vld [vmem:[%s8 + $0x4] sm:$0xf]
    %v823 = vld [vmem:[%s8 + $0x8] sm:$0xf]
    %v824 = vld [vmem:[%s8 + $0xc] sm:$0xf]
    %v825 = vld [vmem:[%s9] sm:$0x1]
    %v827 = vperm.slane %v825, 0
    %v833 = vunpack.c.l.b16 %v821
    %v834 = vunpack.c.l.b16 %v822
    %v835 = vunpack.c.l.b16 %v823
    %v836 = vunpack.c.l.b16 %v824
    %v837 = vpack.c.b16 %v834, %v833
    %v838 = vpack.c.b16 %v836, %v835
    %v842 = vsel %vm83, %v820, 0
    %844 = vmatpush.bf16.msra.mxu0 0
    %845 = vmatpush.bf16.msra.mxu0 0
    %846 = vmatpush.bf16.msra.mxu0 0
    %847 = vmatpush.bf16.msra.mxu0 0
    %848 = vmatpush.bf16.msra.mxu0 0
    %849 = vmatpush.bf16.msra.mxu0 0
    %850 = vmatpush.bf16.msra.mxu0 %v838
    %851 = vmatpush.bf16.msra.mxu0 %v837
    %852 = vmatmul.bf16.gmra.mxu0 %v842
    %v853 = vpop.f32.mrf.mxu0
    %v854 = vadd.f32 %v827, %v853
    %v855 = vpop.f32.mrf.mxu0
    %v856 = vadd.f32 %v827, %v855
    %857 = vdwg.mxu0
    %v858 = vmul.f32 %v854, 0.5
    %v859 = vmul.f32 %v856, 0.5
    %v860 = vmul.f32 %v854, 0.70710677
    %v861 = vmul.f32 %v856, 0.70710677
    %v862 = vmul.f32 %v860, %v860
    %v863 = vmin.f32 16.0, %v862
    %v864 = vmul.f32 %v863, 2.1237322e-06
    %v865 = vadd.f32 %v864, 0.00028619796
    %v866 = vmul.f32 %v863, %v865
    %v867 = vadd.f32 %v866, 0.0036580483
    %v868 = vmul.f32 %v863, %v867
    %v869 = vadd.f32 %v868, 0.05243302
    %v870 = vmul.f32 %v863, %v869
    %v871 = vadd.f32 %v870, 0.18741608
    %v872 = vmul.f32 %v863, %v871
    %v873 = vadd.f32 %v872, 1.1283791
    %v874 = vmul.f32 %v860, %v873
    %v875 = vmul.f32 %v863, 3.8918573e-05
    %v876 = vadd.f32 %v875, 0.001143296
    %v877 = vmul.f32 %v863, %v876
    %v878 = vadd.f32 %v877, 0.014752088
    %v879 = vmul.f32 %v863, %v878
    %v880 = vadd.f32 %v879, 0.112945676
    %v881 = vmul.f32 %v863, %v880
    %v882 = vadd.f32 %v881, 0.4994258
    %v883 = vmul.f32 %v863, %v882
    %v884 = vadd.f32 %v883, 1.0
    %v885 = vrcp.pop %v884
    %v886 = vmul.f32 %v884, %v885
    %v887 = vsub.f32 1.0, %v886
    %v888 = vmul.f32 %v885, %v887
    %v889 = vadd.f32 %v885, %v888
    %vm890 = vweird.f32 %v884
    %vm891 = vweird.f32 %v885
    %vm892 = vmor %vm890, %vm891
    %v893 = vsel %vm892, %v885, %v889
    %v894 = vand.u32 2147483647, %v884
    %vm895 = vcmp.eq.f32.partialorder %v894, 8.507059e+37
    %v896 = vand.u32 %v884, 2147483648
    %v897 = vor.u32 1.1754944e-38, %v896
    %v898 = vsel %vm895, %v897, %v893
    %v899 = vmul.f32 %v874, %v898
    %v900 = vmin.f32 %v899, 1.0
    %v901 = vmax.f32 %v900, -1.0
    %v902 = vmul.f32 %v861, %v861
    %v903 = vmin.f32 16.0, %v902
    %v904 = vmul.f32 %v903, 2.1237322e-06
    %v905 = vadd.f32 %v904, 0.00028619796
    %v906 = vmul.f32 %v903, %v905
    %v907 = vadd.f32 %v906, 0.0036580483
    %v908 = vmul.f32 %v903, %v907
    %v909 = vadd.f32 %v908, 0.05243302
    %v910 = vmul.f32 %v903, %v909
    %v911 = vadd.f32 %v910, 0.18741608
    %v912 = vmul.f32 %v903, %v911
    %v913 = vadd.f32 %v912, 1.1283791
    %v914 = vmul.f32 %v861, %v913
    %v915 = vmul.f32 %v903, 3.8918573e-05
    %v916 = vadd.f32 %v915, 0.001143296
    %v917 = vmul.f32 %v903, %v916
    %v918 = vadd.f32 %v917, 0.014752088
    %v919 = vmul.f32 %v903, %v918
    %v920 = vadd.f32 %v919, 0.112945676
    %v921 = vmul.f32 %v903, %v920
    %v922 = vadd.f32 %v921, 0.4994258
    %v923 = vmul.f32 %v903, %v922
    %v924 = vadd.f32 %v923, 1.0
    %v925 = vrcp.pop %v924
    %v926 = vmul.f32 %v924, %v925
    %v927 = vsub.f32 1.0, %v926
    %v928 = vmul.f32 %v925, %v927
    %v929 = vadd.f32 %v925, %v928
    %vm930 = vweird.f32 %v924
    %vm931 = vweird.f32 %v925
    %vm932 = vmor %vm930, %vm931
    %v933 = vsel %vm932, %v925, %v929
    %v934 = vand.u32 2147483647, %v924
    %vm935 = vcmp.eq.f32.partialorder %v934, 8.507059e+37
    %v936 = vand.u32 %v924, 2147483648
    %v937 = vor.u32 1.1754944e-38, %v936
    %v938 = vsel %vm935, %v937, %v933
    %v939 = vmul.f32 %v914, %v938
    %v940 = vmin.f32 %v939, 1.0
    %v941 = vmax.f32 %v940, -1.0
    %v942 = vadd.f32 %v901, 1.0
    %v943 = vadd.f32 %v941, 1.0
    %v944 = vmul.f32 %v858, %v942
    %v945 = vmul.f32 %v859, %v943
    %v946 = vpack.c.bf16 %v945, %v944
    %v947 = vld [vmem:[%s10] sm:$0xf]
    %v948 = vld [vmem:[%s10 + $0x4] sm:$0xf]
    %v949 = vld [vmem:[%s10 + $0x8] sm:$0xf]
    %v950 = vld [vmem:[%s10 + $0xc] sm:$0xf]
    %v951 = vld [vmem:[%s10 + $0x10] sm:$0xf]
    %v952 = vld [vmem:[%s10 + $0x14] sm:$0xf]
    %v953 = vld [vmem:[%s10 + $0x18] sm:$0xf]
    %v954 = vld [vmem:[%s10 + $0x1c] sm:$0xf]
    %v955 = vld [vmem:[%s11] sm:$0x1]
    %v957 = vperm.slane %v955, 0
    %v967 = vunpack.c.l.b16 %v947
    %v968 = vunpack.c.l.b16 %v948
    %v969 = vunpack.c.l.b16 %v949
    %v970 = vunpack.c.l.b16 %v950
    %v971 = vunpack.c.l.b16 %v951
    %v972 = vunpack.c.l.b16 %v952
    %v973 = vunpack.c.l.b16 %v953
    %v974 = vunpack.c.l.b16 %v954
    %v975 = vpack.c.b16 %v968, %v967
    %v976 = vpack.c.b16 %v970, %v969
    %v977 = vpack.c.b16 %v972, %v971
    %v978 = vpack.c.b16 %v974, %v973
    %vm983 = vcmask 523264
    %v985 = vsel %vm983, %v946, 0
    %987 = vmatpush.bf16.msra.mxu0 0
    %988 = vmatpush.bf16.msra.mxu0 0
    %989 = vmatpush.bf16.msra.mxu0 0
    %990 = vmatpush.bf16.msra.mxu0 0
    %991 = vmatpush.bf16.msra.mxu0 %v978
    %992 = vmatpush.bf16.msra.mxu0 %v977
    %993 = vmatpush.bf16.msra.mxu0 %v976
    %994 = vmatpush.bf16.msra.mxu0 %v975
    %995 = vmatmul.bf16.gmra.mxu0 %v985
    %v996 = vpop.f32.mrf.mxu0
    %v997 = vadd.f32 %v957, %v996
    %v998 = vpop.f32.mrf.mxu0
    %v999 = vadd.f32 %v957, %v998
    %1000 = vdwg.mxu0
    %v1001 = vld [vmem:[%s13] sm:$0x3]
    %v1002 = vadd.f32 %v997, %v818
    %v1003 = vadd.f32 %v999, %v819
    %v1004 = vsel %vm83, %v1002, 0.0
    %1005 = vadd.xlane.f32.xlu0 %v1004
    %v1006 = vpop.xlane.xlu0 %1005
    %v1007 = vsel %vm83, %v1003, 0.0
    %1008 = vadd.xlane.f32.xlu0 %v1007
    %v1009 = vpop.xlane.xlu0 %1008
    %v1010 = vmul.f32 %v1006, %v96
    %v1011 = vmul.f32 %v1009, %v96
    %v1012 = vsub.f32 %v1002, %v1010
    %v1013 = vsub.f32 %v1003, %v1011
    %v1014 = vmul.f32 %v1012, %v1012
    %v1015 = vmul.f32 %v1013, %v1013
    %v1016 = vsel %vm83, %v1014, 0.0
    %1017 = vadd.xlane.f32.xlu0 %v1016
    %v1018 = vpop.xlane.xlu0 %1017
    %v1019 = vsel %vm83, %v1015, 0.0
    %1020 = vadd.xlane.f32.xlu0 %v1019
    %v1021 = vpop.xlane.xlu0 %1020
    %v1022 = vmul.f32 %v1018, %v96
    %v1023 = vmul.f32 %v1021, %v96
    %v1024 = vadd.f32 %v1022, 1e-05
    %v1025 = vadd.f32 %v1023, 1e-05
    %v1026 = vrsqrt.pop %v1024
    %v1027 = vmul.f32 %v1026, %v1024
    %v1028 = vmul.f32 %v1027, %v1026
    %v1029 = vmul.f32 0.5, %v1028
    %v1030 = vsub.f32 1.5, %v1029
    %v1031 = vmul.f32 %v1026, %v1030
    %vm1032 = vweird.f32 %v1024
    %vm1033 = vweird.f32 %v1026
    %vm1034 = vmor %vm1032, %vm1033
    %v1035 = vsel %vm1034, %v1026, %v1031
    %v1036 = vrsqrt.pop %v1025
    %v1037 = vmul.f32 %v1036, %v1025
    %v1038 = vmul.f32 %v1037, %v1036
    %v1039 = vmul.f32 0.5, %v1038
    %v1040 = vsub.f32 1.5, %v1039
    %v1041 = vmul.f32 %v1036, %v1040
    %vm1042 = vweird.f32 %v1025
    %vm1043 = vweird.f32 %v1036
    %vm1044 = vmor %vm1042, %vm1043
    %v1045 = vsel %vm1044, %v1036, %v1041
    %v1046 = vmul.f32 %v1012, %v1035
    %v1047 = vmul.f32 %v1013, %v1045
    %v1048 = vperm.slane %v1001, 0
    %v1049 = vmul.f32 %v1046, %v1048
    %v1050 = vmul.f32 %v1047, %v1048
    %v1051 = vperm.slane %v1001, 1
    %v1052 = vadd.f32 %v1049, %v1051
    %v1053 = vadd.f32 %v1050, %v1051
    %v1054 = vpack.c.bf16 %v1053, %v1052
    %s1055 = scalar_lea.vmem [#allocation2], 144
    %v1056 = vld [vmem:[%s1055] sm:$0xff]
    %v1057 = vld [vmem:[%s1055 + $0x8] sm:$0xff]
    %v1058 = vld [vmem:[%s1055 + $0x10] sm:$0xff]
    %v1059 = vld [vmem:[%s1055 + $0x18] sm:$0xff]
    %v1060 = vld [vmem:[%s1055 + $0x20] sm:$0xf]
    %v1061 = vld [vmem:[%s1055 + $0x24] sm:$0xff]
    %v1062 = vld [vmem:[%s1055 + $0x2c] sm:$0xff]
    %v1063 = vld [vmem:[%s1055 + $0x34] sm:$0xff]
    %v1064 = vld [vmem:[%s1055 + $0x3c] sm:$0xff]
    %v1065 = vld [vmem:[%s1055 + $0x44] sm:$0xf]
    %v1066 = vld [vmem:[%s1055 + $0x48] sm:$0xff]
    %v1067 = vld [vmem:[%s1055 + $0x50] sm:$0xff]
    %v1068 = vld [vmem:[%s1055 + $0x58] sm:$0xff]
    %v1069 = vld [vmem:[%s1055 + $0x60] sm:$0xff]
    %v1070 = vld [vmem:[%s1055 + $0x68] sm:$0xf]
    %v1071 = vld [vmem:[%s1055 + $0x6c] sm:$0xff]
    %v1072 = vld [vmem:[%s1055 + $0x74] sm:$0xff]
    %v1073 = vld [vmem:[%s1055 + $0x7c] sm:$0xff]
    %v1074 = vld [vmem:[%s1055 + $0x84] sm:$0xff]
    %v1075 = vld [vmem:[%s1055 + $0x8c] sm:$0xf]
    %s1076 = scalar_lea.vmem %s5, 9
    %v1077 = vld [vmem:[%s1076] sm:$0xff]
    %v1078 = vld [vmem:[%s1076 + $0x8] sm:$0x1]
    %v1081 = vperm.slane %v1077, 0
    %v1082 = vperm.slane %v1077, 1
    %v1083 = vperm.slane %v1077, 2
    %v1084 = vperm.slane %v1077, 3
    %v1085 = vperm.slane %v1077, 4
    %v1086 = vperm.slane %v1077, 5
    %v1087 = vperm.slane %v1077, 6
    %v1088 = vperm.slane %v1077, 7
    %v1089 = vperm.slane %v1078, 0
    %v1119 = vunpack.c.l.b16 %v1056
    %v1120 = vunpack.c.h.b16 %v1056
    %v1121 = vunpack.c.l.b16 %v1057
    %v1122 = vunpack.c.h.b16 %v1057
    %v1123 = vunpack.c.l.b16 %v1058
    %v1124 = vunpack.c.h.b16 %v1058
    %v1125 = vunpack.c.l.b16 %v1059
    %v1126 = vunpack.c.h.b16 %v1059
    %v1127 = vunpack.c.l.b16 %v1060
    %v1128 = vunpack.c.l.b16 %v1061
    %v1129 = vunpack.c.h.b16 %v1061
    %v1130 = vunpack.c.l.b16 %v1062
    %v1131 = vunpack.c.h.b16 %v1062
    %v1132 = vunpack.c.l.b16 %v1063
    %v1133 = vunpack.c.h.b16 %v1063
    %v1134 = vunpack.c.l.b16 %v1064
    %v1135 = vunpack.c.h.b16 %v1064
    %v1136 = vunpack.c.l.b16 %v1065
    %v1137 = vunpack.c.l.b16 %v1066
    %v1138 = vunpack.c.h.b16 %v1066
    %v1139 = vunpack.c.l.b16 %v1067
    %v1140 = vunpack.c.h.b16 %v1067
    %v1141 = vunpack.c.l.b16 %v1068
    %v1142 = vunpack.c.h.b16 %v1068
    %v1143 = vunpack.c.l.b16 %v1069
    %v1144 = vunpack.c.h.b16 %v1069
    %v1145 = vunpack.c.l.b16 %v1070
    %v1146 = vunpack.c.l.b16 %v1071
    %v1147 = vunpack.c.h.b16 %v1071
    %v1148 = vunpack.c.l.b16 %v1072
    %v1149 = vunpack.c.h.b16 %v1072
    %v1150 = vunpack.c.l.b16 %v1073
    %v1151 = vunpack.c.h.b16 %v1073
    %v1152 = vunpack.c.l.b16 %v1074
    %v1153 = vunpack.c.h.b16 %v1074
    %v1154 = vunpack.c.l.b16 %v1075
    %v1155 = vpack.c.b16 %v1128, %v1119
    %v1156 = vpack.c.b16 %v1129, %v1120
    %v1157 = vpack.c.b16 %v1130, %v1121
    %v1158 = vpack.c.b16 %v1131, %v1122
    %v1159 = vpack.c.b16 %v1132, %v1123
    %v1160 = vpack.c.b16 %v1133, %v1124
    %v1161 = vpack.c.b16 %v1134, %v1125
    %v1162 = vpack.c.b16 %v1135, %v1126
    %v1163 = vpack.c.b16 %v1136, %v1127
    %v1164 = vpack.c.b16 %v1146, %v1137
    %v1165 = vpack.c.b16 %v1147, %v1138
    %v1166 = vpack.c.b16 %v1148, %v1139
    %v1167 = vpack.c.b16 %v1149, %v1140
    %v1168 = vpack.c.b16 %v1150, %v1141
    %v1169 = vpack.c.b16 %v1151, %v1142
    %v1170 = vpack.c.b16 %v1152, %v1143
    %v1171 = vpack.c.b16 %v1153, %v1144
    %v1172 = vpack.c.b16 %v1154, %v1145
    %v1192 = vsel %vm83, %v1054, 0
    %1194 = vmatpush.bf16.msra.mxu0 0
    %1195 = vmatpush.bf16.msra.mxu0 0
    %1196 = vmatpush.bf16.msra.mxu0 0
    %1197 = vmatpush.bf16.msra.mxu0 0
    %1198 = vmatpush.bf16.msra.mxu0 0
    %1199 = vmatpush.bf16.msra.mxu0 0
    %1200 = vmatpush.bf16.msra.mxu0 %v1164
    %1201 = vmatpush.bf16.msra.mxu0 %v1155
    %1202 = vmatmul.bf16.gmra.mxu0 %v1192
    %v1203 = vpop.f32.mrf.mxu0
    %v1204 = vadd.f32 %v1081, %v1203
    %v1205 = vpop.f32.mrf.mxu0
    %v1206 = vadd.f32 %v1081, %v1205
    %1207 = vdwg.mxu0
    %1208 = vmatpush.bf16.msra.mxu0 0
    %1209 = vmatpush.bf16.msra.mxu0 0
    %1210 = vmatpush.bf16.msra.mxu0 0
    %1211 = vmatpush.bf16.msra.mxu0 0
    %1212 = vmatpush.bf16.msra.mxu0 0
    %1213 = vmatpush.bf16.msra.mxu0 0
    %1214 = vmatpush.bf16.msra.mxu0 %v1165
    %1215 = vmatpush.bf16.msra.mxu0 %v1156
    %1216 = vmatmul.bf16.gmra.mxu0 %v1192
    %v1217 = vpop.f32.mrf.mxu0
    %v1218 = vadd.f32 %v1082, %v1217
    %v1219 = vpop.f32.mrf.mxu0
    %v1220 = vadd.f32 %v1082, %v1219
    %1221 = vdwg.mxu0
    %1222 = vmatpush.bf16.msra.mxu0 0
    %1223 = vmatpush.bf16.msra.mxu0 0
    %1224 = vmatpush.bf16.msra.mxu0 0
    %1225 = vmatpush.bf16.msra.mxu0 0
    %1226 = vmatpush.bf16.msra.mxu0 0
    %1227 = vmatpush.bf16.msra.mxu0 0
    %1228 = vmatpush.bf16.msra.mxu0 %v1166
    %1229 = vmatpush.bf16.msra.mxu0 %v1157
    %1230 = vmatmul.bf16.gmra.mxu0 %v1192
    %v1231 = vpop.f32.mrf.mxu0
    %v1232 = vadd.f32 %v1083, %v1231
    %v1233 = vpop.f32.mrf.mxu0
    %v1234 = vadd.f32 %v1083, %v1233
    %1235 = vdwg.mxu0
    %1236 = vmatpush.bf16.msra.mxu0 0
    %1237 = vmatpush.bf16.msra.mxu0 0
    %1238 = vmatpush.bf16.msra.mxu0 0
    %1239 = vmatpush.bf16.msra.mxu0 0
    %1240 = vmatpush.bf16.msra.mxu0 0
    %1241 = vmatpush.bf16.msra.mxu0 0
    %1242 = vmatpush.bf16.msra.mxu0 %v1167
    %1243 = vmatpush.bf16.msra.mxu0 %v1158
    %1244 = vmatmul.bf16.gmra.mxu0 %v1192
    %v1245 = vpop.f32.mrf.mxu0
    %v1246 = vadd.f32 %v1084, %v1245
    %v1247 = vpop.f32.mrf.mxu0
    %v1248 = vadd.f32 %v1084, %v1247
    %1249 = vdwg.mxu0
    %1250 = vmatpush.bf16.msra.mxu0 0
    %1251 = vmatpush.bf16.msra.mxu0 0
    %1252 = vmatpush.bf16.msra.mxu0 0
    %1253 = vmatpush.bf16.msra.mxu0 0
    %1254 = vmatpush.bf16.msra.mxu0 0
    %1255 = vmatpush.bf16.msra.mxu0 0
    %1256 = vmatpush.bf16.msra.mxu0 %v1168
    %1257 = vmatpush.bf16.msra.mxu0 %v1159
    %1258 = vmatmul.bf16.gmra.mxu0 %v1192
    %v1259 = vpop.f32.mrf.mxu0
    %v1260 = vadd.f32 %v1085, %v1259
    %v1261 = vpop.f32.mrf.mxu0
    %v1262 = vadd.f32 %v1085, %v1261
    %1263 = vdwg.mxu0
    %1264 = vmatpush.bf16.msra.mxu0 0
    %1265 = vmatpush.bf16.msra.mxu0 0
    %1266 = vmatpush.bf16.msra.mxu0 0
    %1267 = vmatpush.bf16.msra.mxu0 0
    %1268 = vmatpush.bf16.msra.mxu0 0
    %1269 = vmatpush.bf16.msra.mxu0 0
    %1270 = vmatpush.bf16.msra.mxu0 %v1169
    %1271 = vmatpush.bf16.msra.mxu0 %v1160
    %1272 = vmatmul.bf16.gmra.mxu0 %v1192
    %v1273 = vpop.f32.mrf.mxu0
    %v1274 = vadd.f32 %v1086, %v1273
    %v1275 = vpop.f32.mrf.mxu0
    %v1276 = vadd.f32 %v1086, %v1275
    %1277 = vdwg.mxu0
    %1278 = vmatpush.bf16.msra.mxu0 0
    %1279 = vmatpush.bf16.msra.mxu0 0
    %1280 = vmatpush.bf16.msra.mxu0 0
    %1281 = vmatpush.bf16.msra.mxu0 0
    %1282 = vmatpush.bf16.msra.mxu0 0
    %1283 = vmatpush.bf16.msra.mxu0 0
    %1284 = vmatpush.bf16.msra.mxu0 %v1170
    %1285 = vmatpush.bf16.msra.mxu0 %v1161
    %1286 = vmatmul.bf16.gmra.mxu0 %v1192
    %v1287 = vpop.f32.mrf.mxu0
    %v1288 = vadd.f32 %v1087, %v1287
    %v1289 = vpop.f32.mrf.mxu0
    %v1290 = vadd.f32 %v1087, %v1289
    %1291 = vdwg.mxu0
    %1292 = vmatpush.bf16.msra.mxu0 0
    %1293 = vmatpush.bf16.msra.mxu0 0
    %1294 = vmatpush.bf16.msra.mxu0 0
    %1295 = vmatpush.bf16.msra.mxu0 0
    %1296 = vmatpush.bf16.msra.mxu0 0
    %1297 = vmatpush.bf16.msra.mxu0 0
    %1298 = vmatpush.bf16.msra.mxu0 %v1171
    %1299 = vmatpush.bf16.msra.mxu0 %v1162
    %1300 = vmatmul.bf16.gmra.mxu0 %v1192
    %v1301 = vpop.f32.mrf.mxu0
    %v1302 = vadd.f32 %v1088, %v1301
    %v1303 = vpop.f32.mrf.mxu0
    %v1304 = vadd.f32 %v1088, %v1303
    %1305 = vdwg.mxu0
    %1306 = vmatpush.bf16.msra.mxu0 0
    %1307 = vmatpush.bf16.msra.mxu0 0
    %1308 = vmatpush.bf16.msra.mxu0 0
    %1309 = vmatpush.bf16.msra.mxu0 0
    %1310 = vmatpush.bf16.msra.mxu0 0
    %1311 = vmatpush.bf16.msra.mxu0 0
    %1312 = vmatpush.bf16.msra.mxu0 %v1172
    %1313 = vmatpush.bf16.msra.mxu0 %v1163
    %1314 = vmatmul.bf16.gmra.mxu0 %v1192
    %v1315 = vpop.f32.mrf.mxu0
    %v1316 = vadd.f32 %v1089, %v1315
    %v1317 = vpop.f32.mrf.mxu0
    %v1318 = vadd.f32 %v1089, %v1317
    %1319 = vdwg.mxu0
    %v1320 = vpack.c.bf16 %v1218, %v1204
    %v1321 = vpack.c.bf16 %v1246, %v1232
    %v1322 = vpack.c.bf16 %v1274, %v1260
    %v1323 = vpack.c.bf16 %v1302, %v1288
    %v1324 = vpack.c.bf16 %v1316, %v1316
    %v1325 = vpack.c.bf16 %v1220, %v1206
    %v1326 = vpack.c.bf16 %v1248, %v1234
    %v1327 = vpack.c.bf16 %v1276, %v1262
    %v1328 = vpack.c.bf16 %v1304, %v1290
    %v1329 = vpack.c.bf16 %v1318, %v1318
    %v1332 = vunpack.c.l.b16 %v1320
    %v1333 = vunpack.c.l.b16 %v1325
    %v1334 = vpack.c.b16 %v1333, %v1332
    %v1338 = vunpack.c.l.b16 %v1322
    %v1339 = vunpack.c.l.b16 %v1327
    %v1340 = vpack.c.b16 %v1339, %v1338
    %1342 = vmatpush.bf16.xpose.msra.mxu0 0
    %1343 = vmatpush.bf16.xpose.msra.mxu0 0
    %1344 = vmatpush.bf16.xpose.msra.mxu0 0
    %1345 = vmatpush.bf16.xpose.msra.mxu0 0
    %1346 = vmatpush.bf16.xpose.msra.mxu0 0
    %1347 = vmatpush.bf16.xpose.msra.mxu0 0
    %1348 = vmatpush.bf16.xpose.msra.mxu0 0
    %1349 = vmatpush.bf16.xpose.msra.mxu0 %v1340
    %1350 = vmatmul.bf16.gmra.mxu0 %v1334
    %v1351 = vpop.f32.mrf.mxu0
    %v1352 = vadd.f32 %v141, %v1351
    %v1353 = vpop.f32.mrf.mxu0
    %v1354 = vadd.f32 %v142, %v1353
    %1355 = vdwg.mxu0
    %v1356 = vsel %vm443, %v1352, -inf
    %1357 = vmax.xlane.f32.xlu0 %v1356
    %v1358 = vpop.xlane.xlu0 %1357
    %v1359 = vsel %vm443, %v1354, -inf
    %1360 = vmax.xlane.f32.xlu0 %v1359
    %v1361 = vpop.xlane.xlu0 %1360
    %v1362 = vsub.f32 %v1352, %v1358
    %v1363 = vsub.f32 %v1354, %v1361
    %v1364 = vmul.f32 %v1362, 1.442695
    %v1365 = vpow.pop %v1364
    %v1366 = vmul.f32 %v1363, 1.442695
    %v1367 = vpow.pop %v1366
    %v1368 = vsel %vm443, %v1365, 0.0
    %1369 = vadd.xlane.f32.xlu0 %v1368
    %v1370 = vpop.xlane.xlu0 %1369
    %v1371 = vsel %vm443, %v1367, 0.0
    %1372 = vadd.xlane.f32.xlu0 %v1371
    %v1373 = vpop.xlane.xlu0 %1372
    %v1374 = vrcp.pop %v1370
    %v1375 = vrcp.pop %v1373
    %v1376 = vmul.f32 %v1365, %v1374
    %v1377 = vmul.f32 %v1367, %v1375
    %v1378 = vpack.c.bf16 %v1377, %v1376
    %v1379 = vunpack.c.h.b16 %v1320
    %v1380 = vunpack.c.h.b16 %v1325
    %v1381 = vpack.c.b16 %v1380, %v1379
    %1383 = vmatpush.bf16.xpose.msra.mxu0 0
    %1384 = vmatpush.bf16.xpose.msra.mxu0 0
    %1385 = vmatpush.bf16.xpose.msra.mxu0 0
    %1386 = vmatpush.bf16.xpose.msra.mxu0 0
    %1387 = vmatpush.bf16.xpose.msra.mxu0 0
    %1388 = vmatpush.bf16.xpose.msra.mxu0 0
    %1389 = vmatpush.bf16.xpose.msra.mxu0 0
    %1390 = vmatpush.bf16.xpose.msra.mxu0 %v1340
    %1391 = vmatmul.bf16.gmra.mxu0 %v1381
    %v1392 = vpop.f32.mrf.mxu0
    %v1393 = vadd.f32 %v141, %v1392
    %v1394 = vpop.f32.mrf.mxu0
    %v1395 = vadd.f32 %v142, %v1394
    %1396 = vdwg.mxu0
    %v1397 = vsel %vm443, %v1393, -inf
    %1398 = vmax.xlane.f32.xlu0 %v1397
    %v1399 = vpop.xlane.xlu0 %1398
    %v1400 = vsel %vm443, %v1395, -inf
    %1401 = vmax.xlane.f32.xlu0 %v1400
    %v1402 = vpop.xlane.xlu0 %1401
    %v1403 = vsub.f32 %v1393, %v1399
    %v1404 = vsub.f32 %v1395, %v1402
    %v1405 = vmul.f32 %v1403, 1.442695
    %v1406 = vpow.pop %v1405
    %v1407 = vmul.f32 %v1404, 1.442695
    %v1408 = vpow.pop %v1407
    %v1409 = vsel %vm443, %v1406, 0.0
    %1410 = vadd.xlane.f32.xlu0 %v1409
    %v1411 = vpop.xlane.xlu0 %1410
    %v1412 = vsel %vm443, %v1408, 0.0
    %1413 = vadd.xlane.f32.xlu0 %v1412
    %v1414 = vpop.xlane.xlu0 %1413
    %v1415 = vrcp.pop %v1411
    %v1416 = vrcp.pop %v1414
    %v1417 = vmul.f32 %v1406, %v1415
    %v1418 = vmul.f32 %v1408, %v1416
    %v1419 = vpack.c.bf16 %v1418, %v1417
    %v1422 = vunpack.c.l.b16 %v1323
    %v1423 = vunpack.c.l.b16 %v1328
    %v1424 = vpack.c.b16 %v1423, %v1422
    %v1427 = vsel %vm443, %v1419, 0
    %1429 = vmatpush.bf16.msra.mxu0 0
    %1430 = vmatpush.bf16.msra.mxu0 0
    %1431 = vmatpush.bf16.msra.mxu0 0
    %1432 = vmatpush.bf16.msra.mxu0 0
    %1433 = vmatpush.bf16.msra.mxu0 0
    %1434 = vmatpush.bf16.msra.mxu0 0
    %1435 = vmatpush.bf16.msra.mxu0 0
    %1436 = vmatpush.bf16.msra.mxu0 %v1424
    %1437 = vmatmul.bf16.gmra.mxu0 %v1427
    %v1438 = vpop.f32.mrf.mxu0
    %v1439 = vadd.f32 0.0, %v1438
    %v1440 = vpop.f32.mrf.mxu0
    %v1441 = vadd.f32 0.0, %v1440
    %1442 = vdwg.mxu0
    %v1443 = vunpack.c.h.b16 %v1322
    %v1444 = vunpack.c.h.b16 %v1327
    %v1445 = vpack.c.b16 %v1444, %v1443
    %v1448 = vsel %vm443, %v1378, 0
    %1450 = vmatpush.bf16.msra.mxu0 0
    %1451 = vmatpush.bf16.msra.mxu0 0
    %1452 = vmatpush.bf16.msra.mxu0 0
    %1453 = vmatpush.bf16.msra.mxu0 0
    %1454 = vmatpush.bf16.msra.mxu0 0
    %1455 = vmatpush.bf16.msra.mxu0 0
    %1456 = vmatpush.bf16.msra.mxu0 0
    %1457 = vmatpush.bf16.msra.mxu0 %v1445
    %1458 = vmatmul.bf16.gmra.mxu0 %v1448
    %v1459 = vpop.f32.mrf.mxu0
    %v1460 = vadd.f32 %v1439, %v1459
    %v1461 = vpop.f32.mrf.mxu0
    %v1462 = vadd.f32 %v1441, %v1461
    %1463 = vdwg.mxu0
    %v1466 = vunpack.c.l.b16 %v1321
    %v1467 = vunpack.c.l.b16 %v1326
    %v1468 = vpack.c.b16 %v1467, %v1466
    %1470 = vmatpush.bf16.xpose.msra.mxu0 0
    %1471 = vmatpush.bf16.xpose.msra.mxu0 0
    %1472 = vmatpush.bf16.xpose.msra.mxu0 0
    %1473 = vmatpush.bf16.xpose.msra.mxu0 0
    %1474 = vmatpush.bf16.xpose.msra.mxu0 0
    %1475 = vmatpush.bf16.xpose.msra.mxu0 0
    %1476 = vmatpush.bf16.xpose.msra.mxu0 0
    %1477 = vmatpush.bf16.xpose.msra.mxu0 %v1340
    %1478 = vmatmul.bf16.gmra.mxu0 %v1468
    %v1479 = vpop.f32.mrf.mxu0
    %v1480 = vadd.f32 %v141, %v1479
    %v1481 = vpop.f32.mrf.mxu0
    %v1482 = vadd.f32 %v142, %v1481
    %1483 = vdwg.mxu0
    %v1484 = vsel %vm443, %v1480, -inf
    %1485 = vmax.xlane.f32.xlu0 %v1484
    %v1486 = vpop.xlane.xlu0 %1485
    %v1487 = vsel %vm443, %v1482, -inf
    %1488 = vmax.xlane.f32.xlu0 %v1487
    %v1489 = vpop.xlane.xlu0 %1488
    %v1490 = vsub.f32 %v1480, %v1486
    %v1491 = vsub.f32 %v1482, %v1489
    %v1492 = vmul.f32 %v1490, 1.442695
    %v1493 = vpow.pop %v1492
    %v1494 = vmul.f32 %v1491, 1.442695
    %v1495 = vpow.pop %v1494
    %v1496 = vsel %vm443, %v1493, 0.0
    %1497 = vadd.xlane.f32.xlu0 %v1496
    %v1498 = vpop.xlane.xlu0 %1497
    %v1499 = vsel %vm443, %v1495, 0.0
    %1500 = vadd.xlane.f32.xlu0 %v1499
    %v1501 = vpop.xlane.xlu0 %1500
    %v1502 = vrcp.pop %v1498
    %v1503 = vrcp.pop %v1501
    %v1504 = vmul.f32 %v1493, %v1502
    %v1505 = vmul.f32 %v1495, %v1503
    %v1506 = vpack.c.bf16 %v1505, %v1504
    %v1507 = vunpack.c.h.b16 %v1323
    %v1508 = vunpack.c.h.b16 %v1328
    %v1509 = vpack.c.b16 %v1508, %v1507
    %v1512 = vsel %vm443, %v1506, 0
    %1514 = vmatpush.bf16.msra.mxu0 0
    %1515 = vmatpush.bf16.msra.mxu0 0
    %1516 = vmatpush.bf16.msra.mxu0 0
    %1517 = vmatpush.bf16.msra.mxu0 0
    %1518 = vmatpush.bf16.msra.mxu0 0
    %1519 = vmatpush.bf16.msra.mxu0 0
    %1520 = vmatpush.bf16.msra.mxu0 0
    %1521 = vmatpush.bf16.msra.mxu0 %v1509
    %1522 = vmatmul.bf16.gmra.mxu0 %v1512
    %v1523 = vpop.f32.mrf.mxu0
    %v1524 = vadd.f32 0.0, %v1523
    %v1525 = vpop.f32.mrf.mxu0
    %v1526 = vadd.f32 0.0, %v1525
    %1527 = vdwg.mxu0
    %v1528 = vadd.f32 %v1460, %v1524
    %v1529 = vadd.f32 %v1462, %v1526
    %v1530 = vunpack.c.h.b16 %v1321
    %v1531 = vunpack.c.h.b16 %v1326
    %v1532 = vpack.c.b16 %v1531, %v1530
    %1534 = vmatpush.bf16.xpose.msra.mxu0 0
    %1535 = vmatpush.bf16.xpose.msra.mxu0 0
    %1536 = vmatpush.bf16.xpose.msra.mxu0 0
    %1537 = vmatpush.bf16.xpose.msra.mxu0 0
    %1538 = vmatpush.bf16.xpose.msra.mxu0 0
    %1539 = vmatpush.bf16.xpose.msra.mxu0 0
    %1540 = vmatpush.bf16.xpose.msra.mxu0 0
    %1541 = vmatpush.bf16.xpose.msra.mxu0 %v1340
    %1542 = vmatmul.bf16.gmra.mxu0 %v1532
    %v1543 = vpop.f32.mrf.mxu0
    %v1544 = vadd.f32 %v141, %v1543
    %v1545 = vpop.f32.mrf.mxu0
    %v1546 = vadd.f32 %v142, %v1545
    %1547 = vdwg.mxu0
    %v1548 = vsel %vm443, %v1544, -inf
    %1549 = vmax.xlane.f32.xlu0 %v1548
    %v1550 = vpop.xlane.xlu0 %1549
    %v1551 = vsel %vm443, %v1546, -inf
    %1552 = vmax.xlane.f32.xlu0 %v1551
    %v1553 = vpop.xlane.xlu0 %1552
    %v1554 = vsub.f32 %v1544, %v1550
    %v1555 = vsub.f32 %v1546, %v1553
    %v1556 = vmul.f32 %v1554, 1.442695
    %v1557 = vpow.pop %v1556
    %v1558 = vmul.f32 %v1555, 1.442695
    %v1559 = vpow.pop %v1558
    %v1560 = vsel %vm443, %v1557, 0.0
    %1561 = vadd.xlane.f32.xlu0 %v1560
    %v1562 = vpop.xlane.xlu0 %1561
    %v1563 = vsel %vm443, %v1559, 0.0
    %1564 = vadd.xlane.f32.xlu0 %v1563
    %v1565 = vpop.xlane.xlu0 %1564
    %v1566 = vrcp.pop %v1562
    %v1567 = vrcp.pop %v1565
    %v1568 = vmul.f32 %v1557, %v1566
    %v1569 = vmul.f32 %v1559, %v1567
    %v1570 = vpack.c.bf16 %v1569, %v1568
    %v1573 = vunpack.c.l.b16 %v1324
    %v1574 = vunpack.c.l.b16 %v1329
    %v1575 = vpack.c.b16 %v1574, %v1573
    %v1578 = vsel %vm443, %v1570, 0
    %1580 = vmatpush.bf16.msra.mxu0 0
    %1581 = vmatpush.bf16.msra.mxu0 0
    %1582 = vmatpush.bf16.msra.mxu0 0
    %1583 = vmatpush.bf16.msra.mxu0 0
    %1584 = vmatpush.bf16.msra.mxu0 0
    %1585 = vmatpush.bf16.msra.mxu0 0
    %1586 = vmatpush.bf16.msra.mxu0 0
    %1587 = vmatpush.bf16.msra.mxu0 %v1575
    %1588 = vmatmul.bf16.gmra.mxu0 %v1578
    %v1589 = vpop.f32.mrf.mxu0
    %v1590 = vadd.f32 0.0, %v1589
    %v1591 = vpop.f32.mrf.mxu0
    %v1592 = vadd.f32 0.0, %v1591
    %1593 = vdwg.mxu0
    %v1594 = vadd.f32 %v1528, %v1590
    %v1595 = vadd.f32 %v1529, %v1592
    %v1596 = vpack.c.bf16 %v1595, %v1594
    %s1597 = scalar_lea.vmem %s6, 64
    %v1598 = vld [vmem:[%s1597] sm:$0xf]
    %v1599 = vld [vmem:[%s1597 + $0x4] sm:$0xf]
    %v1600 = vld [vmem:[%s1597 + $0x8] sm:$0xf]
    %v1601 = vld [vmem:[%s1597 + $0xc] sm:$0xf]
    %v1602 = vld [vmem:[%s1597 + $0x10] sm:$0xf]
    %v1603 = vld [vmem:[%s1597 + $0x14] sm:$0xf]
    %v1604 = vld [vmem:[%s1597 + $0x18] sm:$0xf]
    %v1605 = vld [vmem:[%s1597 + $0x1c] sm:$0xf]
    %v1606 = vld [vmem:[%s1597 + $0x20] sm:$0xf]
    %v1607 = vld [vmem:[%s1597 + $0x24] sm:$0xf]
    %v1608 = vld [vmem:[%s1597 + $0x28] sm:$0xf]
    %v1609 = vld [vmem:[%s1597 + $0x2c] sm:$0xf]
    %v1610 = vld [vmem:[%s1597 + $0x30] sm:$0xf]
    %v1611 = vld [vmem:[%s1597 + $0x34] sm:$0xf]
    %v1612 = vld [vmem:[%s1597 + $0x38] sm:$0xf]
    %v1613 = vld [vmem:[%s1597 + $0x3c] sm:$0xf]
    %s1614 = scalar_lea.vmem %s7, 1
    %v1615 = vld [vmem:[%s1614] sm:$0x1]
    %v1617 = vperm.slane %v1615, 0
    %v1635 = vunpack.c.l.b16 %v1598
    %v1636 = vunpack.c.l.b16 %v1599
    %v1637 = vunpack.c.l.b16 %v1600
    %v1638 = vunpack.c.l.b16 %v1601
    %v1639 = vunpack.c.l.b16 %v1602
    %v1640 = vunpack.c.l.b16 %v1603
    %v1641 = vunpack.c.l.b16 %v1604
    %v1642 = vunpack.c.l.b16 %v1605
    %v1643 = vunpack.c.l.b16 %v1606
    %v1644 = vunpack.c.l.b16 %v1607
    %v1645 = vunpack.c.l.b16 %v1608
    %v1646 = vunpack.c.l.b16 %v1609
    %v1647 = vunpack.c.l.b16 %v1610
    %v1648 = vunpack.c.l.b16 %v1611
    %v1649 = vunpack.c.l.b16 %v1612
    %v1650 = vunpack.c.l.b16 %v1613
    %v1651 = vpack.c.b16 %v1636, %v1635
    %v1652 = vpack.c.b16 %v1638, %v1637
    %v1653 = vpack.c.b16 %v1640, %v1639
    %v1654 = vpack.c.b16 %v1642, %v1641
    %v1655 = vpack.c.b16 %v1644, %v1643
    %v1656 = vpack.c.b16 %v1646, %v1645
    %v1657 = vpack.c.b16 %v1648, %v1647
    %v1658 = vpack.c.b16 %v1650, %v1649
    %1667 = vmatpush.bf16.msra.mxu0 %v1658
    %1668 = vmatpush.bf16.msra.mxu0 %v1657
    %1669 = vmatpush.bf16.msra.mxu0 %v1656
    %1670 = vmatpush.bf16.msra.mxu0 %v1655
    %1671 = vmatpush.bf16.msra.mxu0 %v1654
    %1672 = vmatpush.bf16.msra.mxu0 %v1653
    %1673 = vmatpush.bf16.msra.mxu0 %v1652
    %1674 = vmatpush.bf16.msra.mxu0 %v1651
    %1675 = vmatmul.bf16.gmra.mxu0 %v1596
    %v1676 = vpop.f32.mrf.mxu0
    %v1677 = vadd.f32 %v1617, %v1676
    %v1678 = vpop.f32.mrf.mxu0
    %v1679 = vadd.f32 %v1617, %v1678
    %1680 = vdwg.mxu0
    %s1681 = scalar_lea.vmem %s12, 2
    %v1682 = vld [vmem:[%s1681] sm:$0x3]
    %v1683 = vadd.f32 %v1677, %v1052
    %v1684 = vadd.f32 %v1679, %v1053
    %v1685 = vsel %vm83, %v1683, 0.0
    %1686 = vadd.xlane.f32.xlu0 %v1685
    %v1687 = vpop.xlane.xlu0 %1686
    %v1688 = vsel %vm83, %v1684, 0.0
    %1689 = vadd.xlane.f32.xlu0 %v1688
    %v1690 = vpop.xlane.xlu0 %1689
    %v1691 = vmul.f32 %v1687, %v96
    %v1692 = vmul.f32 %v1690, %v96
    %v1693 = vsub.f32 %v1683, %v1691
    %v1694 = vsub.f32 %v1684, %v1692
    %v1695 = vmul.f32 %v1693, %v1693
    %v1696 = vmul.f32 %v1694, %v1694
    %v1697 = vsel %vm83, %v1695, 0.0
    %1698 = vadd.xlane.f32.xlu0 %v1697
    %v1699 = vpop.xlane.xlu0 %1698
    %v1700 = vsel %vm83, %v1696, 0.0
    %1701 = vadd.xlane.f32.xlu0 %v1700
    %v1702 = vpop.xlane.xlu0 %1701
    %v1703 = vmul.f32 %v1699, %v96
    %v1704 = vmul.f32 %v1702, %v96
    %v1705 = vadd.f32 %v1703, 1e-05
    %v1706 = vadd.f32 %v1704, 1e-05
    %v1707 = vrsqrt.pop %v1705
    %v1708 = vmul.f32 %v1707, %v1705
    %v1709 = vmul.f32 %v1708, %v1707
    %v1710 = vmul.f32 0.5, %v1709
    %v1711 = vsub.f32 1.5, %v1710
    %v1712 = vmul.f32 %v1707, %v1711
    %vm1713 = vweird.f32 %v1705
    %vm1714 = vweird.f32 %v1707
    %vm1715 = vmor %vm1713, %vm1714
    %v1716 = vsel %vm1715, %v1707, %v1712
    %v1717 = vrsqrt.pop %v1706
    %v1718 = vmul.f32 %v1717, %v1706
    %v1719 = vmul.f32 %v1718, %v1717
    %v1720 = vmul.f32 0.5, %v1719
    %v1721 = vsub.f32 1.5, %v1720
    %v1722 = vmul.f32 %v1717, %v1721
    %vm1723 = vweird.f32 %v1706
    %vm1724 = vweird.f32 %v1717
    %vm1725 = vmor %vm1723, %vm1724
    %v1726 = vsel %vm1725, %v1717, %v1722
    %v1727 = vmul.f32 %v1693, %v1716
    %v1728 = vmul.f32 %v1694, %v1726
    %v1729 = vperm.slane %v1682, 0
    %v1730 = vmul.f32 %v1727, %v1729
    %v1731 = vmul.f32 %v1728, %v1729
    %v1732 = vperm.slane %v1682, 1
    %v1733 = vadd.f32 %v1730, %v1732
    %v1734 = vadd.f32 %v1731, %v1732
    %v1735 = vpack.c.bf16 %v1734, %v1733
    %s1736 = scalar_lea.vmem %s8, 16
    %v1737 = vld [vmem:[%s1736] sm:$0xf]
    %v1738 = vld [vmem:[%s1736 + $0x4] sm:$0xf]
    %v1739 = vld [vmem:[%s1736 + $0x8] sm:$0xf]
    %v1740 = vld [vmem:[%s1736 + $0xc] sm:$0xf]
    %s1741 = scalar_lea.vmem %s9, 1
    %v1742 = vld [vmem:[%s1741] sm:$0x1]
    %v1744 = vperm.slane %v1742, 0
    %v1750 = vunpack.c.l.b16 %v1737
    %v1751 = vunpack.c.l.b16 %v1738
    %v1752 = vunpack.c.l.b16 %v1739
    %v1753 = vunpack.c.l.b16 %v1740
    %v1754 = vpack.c.b16 %v1751, %v1750
    %v1755 = vpack.c.b16 %v1753, %v1752
    %v1759 = vsel %vm83, %v1735, 0
    %1761 = vmatpush.bf16.msra.mxu0 0
    %1762 = vmatpush.bf16.msra.mxu0 0
    %1763 = vmatpush.bf16.msra.mxu0 0
    %1764 = vmatpush.bf16.msra.mxu0 0
    %1765 = vmatpush.bf16.msra.mxu0 0
    %1766 = vmatpush.bf16.msra.mxu0 0
    %1767 = vmatpush.bf16.msra.mxu0 %v1755
    %1768 = vmatpush.bf16.msra.mxu0 %v1754
    %1769 = vmatmul.bf16.gmra.mxu0 %v1759
    %v1770 = vpop.f32.mrf.mxu0
    %v1771 = vadd.f32 %v1744, %v1770
    %v1772 = vpop.f32.mrf.mxu0
    %v1773 = vadd.f32 %v1744, %v1772
    %1774 = vdwg.mxu0
    %v1775 = vmul.f32 %v1771, 0.5
    %v1776 = vmul.f32 %v1773, 0.5
    %v1777 = vmul.f32 %v1771, 0.70710677
    %v1778 = vmul.f32 %v1773, 0.70710677
    %v1779 = vmul.f32 %v1777, %v1777
    %v1780 = vmin.f32 16.0, %v1779
    %v1781 = vmul.f32 %v1780, 2.1237322e-06
    %v1782 = vadd.f32 %v1781, 0.00028619796
    %v1783 = vmul.f32 %v1780, %v1782
    %v1784 = vadd.f32 %v1783, 0.0036580483
    %v1785 = vmul.f32 %v1780, %v1784
    %v1786 = vadd.f32 %v1785, 0.05243302
    %v1787 = vmul.f32 %v1780, %v1786
    %v1788 = vadd.f32 %v1787, 0.18741608
    %v1789 = vmul.f32 %v1780, %v1788
    %v1790 = vadd.f32 %v1789, 1.1283791
    %v1791 = vmul.f32 %v1777, %v1790
    %v1792 = vmul.f32 %v1780, 3.8918573e-05
    %v1793 = vadd.f32 %v1792, 0.001143296
    %v1794 = vmul.f32 %v1780, %v1793
    %v1795 = vadd.f32 %v1794, 0.014752088
    %v1796 = vmul.f32 %v1780, %v1795
    %v1797 = vadd.f32 %v1796, 0.112945676
    %v1798 = vmul.f32 %v1780, %v1797
    %v1799 = vadd.f32 %v1798, 0.4994258
    %v1800 = vmul.f32 %v1780, %v1799
    %v1801 = vadd.f32 %v1800, 1.0
    %v1802 = vrcp.pop %v1801
    %v1803 = vmul.f32 %v1801, %v1802
    %v1804 = vsub.f32 1.0, %v1803
    %v1805 = vmul.f32 %v1802, %v1804
    %v1806 = vadd.f32 %v1802, %v1805
    %vm1807 = vweird.f32 %v1801
    %vm1808 = vweird.f32 %v1802
    %vm1809 = vmor %vm1807, %vm1808
    %v1810 = vsel %vm1809, %v1802, %v1806
    %v1811 = vand.u32 2147483647, %v1801
    %vm1812 = vcmp.eq.f32.partialorder %v1811, 8.507059e+37
    %v1813 = vand.u32 %v1801, 2147483648
    %v1814 = vor.u32 1.1754944e-38, %v1813
    %v1815 = vsel %vm1812, %v1814, %v1810
    %v1816 = vmul.f32 %v1791, %v1815
    %v1817 = vmin.f32 %v1816, 1.0
    %v1818 = vmax.f32 %v1817, -1.0
    %v1819 = vmul.f32 %v1778, %v1778
    %v1820 = vmin.f32 16.0, %v1819
    %v1821 = vmul.f32 %v1820, 2.1237322e-06
    %v1822 = vadd.f32 %v1821, 0.00028619796
    %v1823 = vmul.f32 %v1820, %v1822
    %v1824 = vadd.f32 %v1823, 0.0036580483
    %v1825 = vmul.f32 %v1820, %v1824
    %v1826 = vadd.f32 %v1825, 0.05243302
    %v1827 = vmul.f32 %v1820, %v1826
    %v1828 = vadd.f32 %v1827, 0.18741608
    %v1829 = vmul.f32 %v1820, %v1828
    %v1830 = vadd.f32 %v1829, 1.1283791
    %v1831 = vmul.f32 %v1778, %v1830
    %v1832 = vmul.f32 %v1820, 3.8918573e-05
    %v1833 = vadd.f32 %v1832, 0.001143296
    %v1834 = vmul.f32 %v1820, %v1833
    %v1835 = vadd.f32 %v1834, 0.014752088
    %v1836 = vmul.f32 %v1820, %v1835
    %v1837 = vadd.f32 %v1836, 0.112945676
    %v1838 = vmul.f32 %v1820, %v1837
    %v1839 = vadd.f32 %v1838, 0.4994258
    %v1840 = vmul.f32 %v1820, %v1839
    %v1841 = vadd.f32 %v1840, 1.0
    %v1842 = vrcp.pop %v1841
    %v1843 = vmul.f32 %v1841, %v1842
    %v1844 = vsub.f32 1.0, %v1843
    %v1845 = vmul.f32 %v1842, %v1844
    %v1846 = vadd.f32 %v1842, %v1845
    %vm1847 = vweird.f32 %v1841
    %vm1848 = vweird.f32 %v1842
    %vm1849 = vmor %vm1847, %vm1848
    %v1850 = vsel %vm1849, %v1842, %v1846
    %v1851 = vand.u32 2147483647, %v1841
    %vm1852 = vcmp.eq.f32.partialorder %v1851, 8.507059e+37
    %v1853 = vand.u32 %v1841, 2147483648
    %v1854 = vor.u32 1.1754944e-38, %v1853
    %v1855 = vsel %vm1852, %v1854, %v1850
    %v1856 = vmul.f32 %v1831, %v1855
    %v1857 = vmin.f32 %v1856, 1.0
    %v1858 = vmax.f32 %v1857, -1.0
    %v1859 = vadd.f32 %v1818, 1.0
    %v1860 = vadd.f32 %v1858, 1.0
    %v1861 = vmul.f32 %v1775, %v1859
    %v1862 = vmul.f32 %v1776, %v1860
    %v1863 = vpack.c.bf16 %v1862, %v1861
    %s1864 = scalar_lea.vmem %s10, 32
    %v1865 = vld [vmem:[%s1864] sm:$0xf]
    %v1866 = vld [vmem:[%s1864 + $0x4] sm:$0xf]
    %v1867 = vld [vmem:[%s1864 + $0x8] sm:$0xf]
    %v1868 = vld [vmem:[%s1864 + $0xc] sm:$0xf]
    %v1869 = vld [vmem:[%s1864 + $0x10] sm:$0xf]
    %v1870 = vld [vmem:[%s1864 + $0x14] sm:$0xf]
    %v1871 = vld [vmem:[%s1864 + $0x18] sm:$0xf]
    %v1872 = vld [vmem:[%s1864 + $0x1c] sm:$0xf]
    %s1873 = scalar_lea.vmem %s11, 1
    %v1874 = vld [vmem:[%s1873] sm:$0x1]
    %v1876 = vperm.slane %v1874, 0
    %v1886 = vunpack.c.l.b16 %v1865
    %v1887 = vunpack.c.l.b16 %v1866
    %v1888 = vunpack.c.l.b16 %v1867
    %v1889 = vunpack.c.l.b16 %v1868
    %v1890 = vunpack.c.l.b16 %v1869
    %v1891 = vunpack.c.l.b16 %v1870
    %v1892 = vunpack.c.l.b16 %v1871
    %v1893 = vunpack.c.l.b16 %v1872
    %v1894 = vpack.c.b16 %v1887, %v1886
    %v1895 = vpack.c.b16 %v1889, %v1888
    %v1896 = vpack.c.b16 %v1891, %v1890
    %v1897 = vpack.c.b16 %v1893, %v1892
    %v1903 = vsel %vm983, %v1863, 0
    %1905 = vmatpush.bf16.msra.mxu0 0
    %1906 = vmatpush.bf16.msra.mxu0 0
    %1907 = vmatpush.bf16.msra.mxu0 0
    %1908 = vmatpush.bf16.msra.mxu0 0
    %1909 = vmatpush.bf16.msra.mxu0 %v1897
    %1910 = vmatpush.bf16.msra.mxu0 %v1896
    %1911 = vmatpush.bf16.msra.mxu0 %v1895
    %1912 = vmatpush.bf16.msra.mxu0 %v1894
    %1913 = vmatmul.bf16.gmra.mxu0 %v1903
    %v1914 = vpop.f32.mrf.mxu0
    %v1915 = vadd.f32 %v1876, %v1914
    %v1916 = vpop.f32.mrf.mxu0
    %v1917 = vadd.f32 %v1876, %v1916
    %1918 = vdwg.mxu0
    %s1919 = scalar_lea.vmem %s13, 2
    %v1920 = vld [vmem:[%s1919] sm:$0x3]
    %v1921 = vadd.f32 %v1915, %v1733
    %v1922 = vadd.f32 %v1917, %v1734
    %v1923 = vsel %vm83, %v1921, 0.0
    %1924 = vadd.xlane.f32.xlu0 %v1923
    %v1925 = vpop.xlane.xlu0 %1924
    %v1926 = vsel %vm83, %v1922, 0.0
    %1927 = vadd.xlane.f32.xlu0 %v1926
    %v1928 = vpop.xlane.xlu0 %1927
    %v1929 = vmul.f32 %v1925, %v96
    %v1930 = vmul.f32 %v1928, %v96
    %v1931 = vsub.f32 %v1921, %v1929
    %v1932 = vsub.f32 %v1922, %v1930
    %v1933 = vmul.f32 %v1931, %v1931
    %v1934 = vmul.f32 %v1932, %v1932
    %v1935 = vsel %vm83, %v1933, 0.0
    %1936 = vadd.xlane.f32.xlu0 %v1935
    %v1937 = vpop.xlane.xlu0 %1936
    %v1938 = vsel %vm83, %v1934, 0.0
    %1939 = vadd.xlane.f32.xlu0 %v1938
    %v1940 = vpop.xlane.xlu0 %1939
    %v1941 = vmul.f32 %v1937, %v96
    %v1942 = vmul.f32 %v1940, %v96
    %v1943 = vadd.f32 %v1941, 1e-05
    %v1944 = vadd.f32 %v1942, 1e-05
    %v1945 = vrsqrt.pop %v1943
    %v1946 = vmul.f32 %v1945, %v1943
    %v1947 = vmul.f32 %v1946, %v1945
    %v1948 = vmul.f32 0.5, %v1947
    %v1949 = vsub.f32 1.5, %v1948
    %v1950 = vmul.f32 %v1945, %v1949
    %vm1951 = vweird.f32 %v1943
    %vm1952 = vweird.f32 %v1945
    %vm1953 = vmor %vm1951, %vm1952
    %v1954 = vsel %vm1953, %v1945, %v1950
    %v1955 = vrsqrt.pop %v1944
    %v1956 = vmul.f32 %v1955, %v1944
    %v1957 = vmul.f32 %v1956, %v1955
    %v1958 = vmul.f32 0.5, %v1957
    %v1959 = vsub.f32 1.5, %v1958
    %v1960 = vmul.f32 %v1955, %v1959
    %vm1961 = vweird.f32 %v1944
    %vm1962 = vweird.f32 %v1955
    %vm1963 = vmor %vm1961, %vm1962
    %v1964 = vsel %vm1963, %v1955, %v1960
    %v1965 = vmul.f32 %v1931, %v1954
    %v1966 = vmul.f32 %v1932, %v1964
    %v1967 = vperm.slane %v1920, 0
    %v1968 = vmul.f32 %v1965, %v1967
    %v1969 = vmul.f32 %v1966, %v1967
    %v1970 = vperm.slane %v1920, 1
    %v1971 = vadd.f32 %v1968, %v1970
    %v1972 = vadd.f32 %v1969, %v1970
    %v1973 = vld [vmem:[%s0] sm:$0x3]
    %v1975 = vsel %vm443, %v1973, 0
    %1977 = vmatpush.msra.mxu0 0.0
    %1978 = vmatpush.msra.mxu0 0.0
    %1979 = vmatpush.msra.mxu0 0.0
    %1980 = vmatpush.msra.mxu0 0.0
    %1981 = vmatpush.msra.mxu0 0.0
    %1982 = vmatpush.msra.mxu0 0.0
    %1983 = vmatpush.msra.mxu0 0.0
    %1984 = vmatpush.msra.mxu0 0.0
    %1985 = vmatpush.msra.mxu0 0.0
    %1986 = vmatpush.msra.mxu0 0.0
    %1987 = vmatpush.msra.mxu0 0.0
    %1988 = vmatpush.msra.mxu0 0.0
    %1989 = vmatpush.msra.mxu0 0.0
    %1990 = vmatpush.msra.mxu0 0.0
    %1991 = vmatpush.msra.mxu0 %v1972
    %1992 = vmatpush.msra.mxu0 %v1971
    %1993 = vmatmul.f32.gmra.mxu0 %v1975
    %v1994 = vpop.f32.mrf.mxu0
    %v1995 = vadd.f32 0.0, %v1994
    %1996 = vdwg.mxu0
    %v1997 = vpack.c.bf16 %v1995, %v1995
    %v1998 = vld [vmem:[%s14] sm:$0xf]
    %v1999 = vld [vmem:[%s14 + $0x4] sm:$0xf]
    %v2000 = vld [vmem:[%s14 + $0x8] sm:$0xf]
    %v2001 = vld [vmem:[%s14 + $0xc] sm:$0xf]
    %v2002 = vld [vmem:[%s15] sm:$0x1]
    %v2004 = vperm.slane %v2002, 0
    %v2010 = vunpack.c.l.b16 %v1998
    %v2011 = vunpack.c.l.b16 %v1999
    %v2012 = vunpack.c.l.b16 %v2000
    %v2013 = vunpack.c.l.b16 %v2001
    %v2014 = vpack.c.b16 %v2011, %v2010
    %v2015 = vpack.c.b16 %v2013, %v2012
    %v2019 = vsel %vm83, %v1997, 0
    %2021 = vmatpush.bf16.msra.mxu0 0
    %2022 = vmatpush.bf16.msra.mxu0 0
    %2023 = vmatpush.bf16.msra.mxu0 0
    %2024 = vmatpush.bf16.msra.mxu0 0
    %2025 = vmatpush.bf16.msra.mxu0 0
    %2026 = vmatpush.bf16.msra.mxu0 0
    %2027 = vmatpush.bf16.msra.mxu0 %v2015
    %2028 = vmatpush.bf16.msra.mxu0 %v2014
    %2029 = vmatmul.bf16.gmra.mxu0 %v2019
    %v2030 = vpop.f32.mrf.mxu0
    %v2031 = vadd.f32 %v2004, %v2030
    %v2032 = vpop.f32.mrf.mxu0
    %2033 = vdwg.mxu0
    %v2034 = vtanh.pop %v2031
    %v2035 = vpack.c.bf16 %v2034, %v2034
    %v2036 = vld [vmem:[%s16] sm:$0xf]
    %v2037 = vld [vmem:[%s16 + $0x4] sm:$0xf]
    %v2038 = vld [vmem:[%s16 + $0x8] sm:$0xf]
    %v2039 = vld [vmem:[%s16 + $0xc] sm:$0xf]
    %v2040 = vld [vmem:[%s17] sm:$0x1]
    %v2042 = vperm.slane %v2040, 0
    %v2048 = vunpack.c.l.b16 %v2036
    %v2049 = vunpack.c.l.b16 %v2037
    %v2050 = vunpack.c.l.b16 %v2038
    %v2051 = vunpack.c.l.b16 %v2039
    %v2052 = vpack.c.b16 %v2049, %v2048
    %v2053 = vpack.c.b16 %v2051, %v2050
    %v2057 = vsel %vm83, %v2035, 0
    %2059 = vmatpush.bf16.msra.mxu0 0
    %2060 = vmatpush.bf16.msra.mxu0 0
    %2061 = vmatpush.bf16.msra.mxu0 0
    %2062 = vmatpush.bf16.msra.mxu0 0
    %2063 = vmatpush.bf16.msra.mxu0 0
    %2064 = vmatpush.bf16.msra.mxu0 0
    %2065 = vmatpush.bf16.msra.mxu0 %v2053
    %2066 = vmatpush.bf16.msra.mxu0 %v2052
    %2067 = vmatmul.bf16.gmra.mxu0 %v2057
    %v2068 = vpop.f32.mrf.mxu0
    %v2069 = vadd.f32 %v2042, %v2068
    %v2070 = vpop.f32.mrf.mxu0
    %2071 = vdwg.mxu0
    %vm2072 = vcmask 17408
    %2073 = vst.msk [vmem:[#allocation5] sm:$0x3] %vm2072, %v2069
    %v2074 = vxor.u32 %v2069, 2147483648
    %v2075 = vmul.f32 %v2074, 1.442695
    %v2076 = vpow.pop %v2075
    %v2077 = vadd.f32 %v2076, 1.0
    %v2078 = vrcp.pop %v2077
    %v2079 = vmul.f32 %v2077, %v2078
    %v2080 = vsub.f32 1.0, %v2079
    %v2081 = vmul.f32 %v2078, %v2080
    %v2082 = vadd.f32 %v2078, %v2081
    %vm2083 = vweird.f32 %v2077
    %vm2084 = vweird.f32 %v2078
    %vm2085 = vmor %vm2083, %vm2084
    %v2086 = vsel %vm2085, %v2078, %v2082
    %v2087 = vand.u32 2147483647, %v2077
    %vm2088 = vcmp.eq.f32.partialorder %v2087, 8.507059e+37
    %v2089 = vand.u32 %v2077, 2147483648
    %v2090 = vor.u32 1.1754944e-38, %v2089
    %v2091 = vsel %vm2088, %v2090, %v2086
    %v2092 = vmul.f32 1.0, %v2091
    %2093 = vst.msk [vmem:[#allocation6] sm:$0x3] %vm2072, %v2092
    // Predicated region
    $region78: #{bertweet_base_sentiment.1} parent=1 // pred_check
      _
    $region79: #{bertweet_base_sentiment.1} parent=1 // pred_check_branch
      %2095 = sbr.rel (0) target = $region81
    $region80: #{bertweet_base_sentiment.1} parent=1 // pred_region
      %2097 = vsyncadd [#allocation4], 0
      %s2099 = sshll.u32 [#allocation5], 4
      %s2100 = int_to_ptr.vmem [resolvable:$true] %s2099
      %s2101 = sshll.u32 %s18, 4
      %s2102 = int_to_ptr.hbm [resolvable:$true] %s2101
      %2104 = dma.vmem_to_hbm [thread:$0]  %s2100, 32, %s2102, [#allocation4]
    $region81: #{bertweet_base_sentiment.1} parent=1 // pred_fallthru
      _
    // Predicated region
    $region82: #{bertweet_base_sentiment.1} parent=1 // pred_check
      _
    $region83: #{bertweet_base_sentiment.1} parent=1 // pred_check_branch
      %2106 = sbr.rel (0) target = $region85
    $region84: #{bertweet_base_sentiment.1} parent=1 // pred_region
      %2108 = vsyncadd [#allocation7], 0
      %s2110 = sshll.u32 [#allocation6], 4
      %s2111 = int_to_ptr.vmem [resolvable:$true] %s2110
      %s2112 = sshll.u32 %s19, 4
      %s2113 = int_to_ptr.hbm [resolvable:$true] %s2112
      %2115 = dma.vmem_to_hbm [thread:$0]  %s2111, 32, %s2113, [#allocation7]
    $region85: #{bertweet_base_sentiment.1} parent=1 // pred_fallthru
      _
    // Predicated region
    $region86: #{bertweet_base_sentiment.1} parent=1 // pred_check
      _
    $region87: #{bertweet_base_sentiment.1} parent=1 // pred_check_branch
      %2117 = sbr.rel (0) target = $region89
    $region88: #{bertweet_base_sentiment.1} parent=1 // pred_region
      %2119 = dma.done [#allocation4], 32
    $region89: #{bertweet_base_sentiment.1} parent=1 // pred_fallthru
      _
    // Predicated region
    $region90: #{bertweet_base_sentiment.1} parent=1 // pred_check
      _
    $region91: #{bertweet_base_sentiment.1} parent=1 // pred_check_branch
      %2121 = sbr.rel (0) target = $region93
    $region92: #{bertweet_base_sentiment.1} parent=1 // pred_region
      %2123 = dma.done [#allocation7], 32
    $region93: #{bertweet_base_sentiment.1} parent=1 // pred_fallthru
      _
    %2124 = vsyncpa [#allocation3], 1
    %2125 = vsyncpa [#allocation4], 1
    %2126 = vsyncpa [#allocation7], 1

</llo_original>
